<compile_context>
chip_gen: v6e
topology: v6e:2x2x1
jax: 0.10.0
libtpu: 0.0.40
codegen_flags: <defaults>
</compile_context>

<pallas_src>
import functools
import math

import jax
import jax.numpy as jnp
import numpy as np
from jax.experimental import pallas as pl
from jax.experimental.pallas import tpu as pltpu

LS = 256                 # self.ls in the PyTorch module (hard-coded there)
NEG_SLOPE = 0.01         # F.leaky_relu default negative_slope
L1 = 256                 # width of main MLP hidden layers (l1 = l2 = 256)


def _leaky(x):
    return jnp.where(x > 0, x, NEG_SLOPE * x)


def _fused_kernel(pw_ref, pb_ref, inp_ref, avg_ref,
                  wh1w_ref, wh1b_ref, wh23_ref, hbias_ref,
                  w1s_ref, w1m_ref, bmain_ref, w2_ref, wout_ref, bout_ref,
                  out_ref):
    """Both critic heads in one body; all refs are full-array VMEM blocks.

    Lane layouts:
      hyper-net hidden (128 lanes): [hp1 | hp2 | hb1 | hb2]   (rep_dim each)
      main MLP hidden (512 lanes):  [head1 (256) | head2 (256)]
    """
    mm = lambda x, w: jnp.dot(x, w, preferred_element_type=jnp.float32)

    # --- hyper-network: 4 chains lane-packed into one 128-lane ladder -------
    h = mm(pw_ref[...], wh1w_ref[...]) + mm(pb_ref[...], wh1b_ref[...]) \
        + hbias_ref[0:1, :]
    h = _leaky(h)
    h = _leaky(mm(h, wh23_ref[0]) + hbias_ref[1:2, :])
    h = mm(h, wh23_ref[1]) + hbias_ref[2:3, :]          # (B*A, 4*rep)

    # mean over the action axis == averaging-matrix matmul
    m = mm(avg_ref[...], h)                              # (B, 4*rep)

    # --- main MLP, both heads lane-packed into 512 lanes --------------------
    # cat([input, mean_b, mean_p]) @ W1 + b1  ==  sum of block matmuls
    g = _leaky(mm(inp_ref[...], w1s_ref[...]) + mm(m, w1m_ref[...])
               + bmain_ref[0:1, :])
    g = _leaky(mm(g, w2_ref[...]) + bmain_ref[1:2, :])
    out_ref[...] = mm(g, wout_ref[...]) + bout_ref[...]  # (B, 2)


def init_params(key, state_dim, action_dim, rep_dim):
    """Deterministic PyTorch-style (uniform +/- 1/sqrt(fan_in)) init."""
    input_dim = state_dim + action_dim
    specs = {
        'policy_w_l1': (LS + 1, rep_dim), 'policy_w_l2': (rep_dim, rep_dim), 'policy_w_l3': (rep_dim, rep_dim),
        'policy_b_l1': (LS + 1, rep_dim), 'policy_b_l2': (rep_dim, rep_dim), 'policy_b_l3': (rep_dim, rep_dim),
        'policy_w_l4': (LS + 1, rep_dim), 'policy_w_l5': (rep_dim, rep_dim), 'policy_w_l6': (rep_dim, rep_dim),
        'policy_b_l4': (LS + 1, rep_dim), 'policy_b_l5': (rep_dim, rep_dim), 'policy_b_l6': (rep_dim, rep_dim),
        'w_l1': (input_dim + 2 * rep_dim, L1), 'w_l2': (L1, L1), 'w_out': (L1, 1),
        'w_l3': (input_dim + 2 * rep_dim, L1), 'w_l4': (L1, L1), 'w_out_2': (L1, 1),
    }
    params = {}
    keys = jax.random.split(key, len(specs))
    for k, (name, (fin, fout)) in zip(keys, specs.items()):
        kw, kb = jax.random.split(k)
        bound = 1.0 / math.sqrt(fin)
        W = jax.random.uniform(kw, (fout, fin), jnp.float32, -bound, bound)
        b = jax.random.uniform(kb, (fout,), jnp.float32, -bound, bound)
        if name in ('w_out', 'w_out_2'):   # .weight.data.mul_(0.1) / .bias.data.mul_(0.1)
            W = W * 0.1
            b = b * 0.1
        params[name] = (W, b)
    return params


def prepare_packed_weights(params, state_dim, action_dim, rep_dim, batch):
    """One-time host-side packing of PyTorch-layout params into MXU-friendly slabs."""
    R = rep_dim
    input_dim = state_dim + action_dim
    f32 = np.float32

    def WT(name):
        return np.asarray(params[name][0], f32).T     # (in, out)

    def bias(name):
        return np.asarray(params[name][1], f32)

    # hyper-net layer 1: lanes [hp1 | hp2 | hb1 | hb2]
    wh1w = np.zeros((LS + 1, 4 * R), f32)
    wh1w[:, 0:R] = WT('policy_w_l1')
    wh1w[:, R:2 * R] = WT('policy_w_l4')
    wh1b = np.zeros((LS + 1, 4 * R), f32)
    wh1b[:, 2 * R:3 * R] = WT('policy_b_l1')
    wh1b[:, 3 * R:4 * R] = WT('policy_b_l4')

    def blkdiag(names, width):
        w = np.zeros((len(names) * width, len(names) * width), f32)
        for i, n in enumerate(names):
            w[i * width:(i + 1) * width, i * width:(i + 1) * width] = WT(n)
        return w

    wh2 = blkdiag(('policy_w_l2', 'policy_w_l5', 'policy_b_l2', 'policy_b_l5'), R)
    wh3 = blkdiag(('policy_w_l3', 'policy_w_l6', 'policy_b_l3', 'policy_b_l6'), R)
    wh23 = np.stack([wh2, wh3])                               # (2, 128, 128)

    hbias = np.stack([
        np.concatenate([bias('policy_w_l1'), bias('policy_w_l4'),
                        bias('policy_b_l1'), bias('policy_b_l4')]),
        np.concatenate([bias('policy_w_l2'), bias('policy_w_l5'),
                        bias('policy_b_l2'), bias('policy_b_l5')]),
        np.concatenate([bias('policy_w_l3'), bias('policy_w_l6'),
                        bias('policy_b_l3'), bias('policy_b_l6')]),
    ])                                                        # (3, 128)

    # main layer 1: cat([input, mean_b, mean_p]) @ W1.T, lane-packed over heads
    w1_h1 = WT('w_l1')            # (input_dim + 2R, 256)
    w1_h2 = WT('w_l3')
    w1s = np.concatenate([w1_h1[:input_dim], w1_h2[:input_dim]], axis=1)  # (input_dim, 512)
    w1m = np.zeros((4 * R, 2 * L1), f32)
    # packed-mean lane layout: [mp1 | mp2 | mb1 | mb2]
    w1m[0:R, 0:L1] = w1_h1[input_dim + R:input_dim + 2 * R]        # mean_p seg, head 1
    w1m[R:2 * R, L1:2 * L1] = w1_h2[input_dim + R:input_dim + 2 * R]
    w1m[2 * R:3 * R, 0:L1] = w1_h1[input_dim:input_dim + R]        # mean_b seg, head 1
    w1m[3 * R:4 * R, L1:2 * L1] = w1_h2[input_dim:input_dim + R]

    bmain = np.stack([
        np.concatenate([bias('w_l1'), bias('w_l3')]),
        np.concatenate([bias('w_l2'), bias('w_l4')]),
    ])                                                        # (2, 512)

    w2bd = np.zeros((2 * L1, 2 * L1), f32)                    # block-diag layer 2
    w2bd[0:L1, 0:L1] = WT('w_l2')
    w2bd[L1:2 * L1, L1:2 * L1] = WT('w_l4')

    wout = np.zeros((2 * L1, 2), f32)
    wout[0:L1, 0:1] = WT('w_out')
    wout[L1:2 * L1, 1:2] = WT('w_out_2')
    bout = np.concatenate([bias('w_out'), bias('w_out_2')]).reshape(1, 2)

    # (B, B*A) averaging matrix: avg[b, b*A + a] = 1/A   (precomputed once)
    avg = np.repeat(np.eye(batch, dtype=f32), action_dim, axis=1) / action_dim

    arrays = (wh1w, wh1b, wh23, hbias, w1s, w1m, bmain, w2bd, wout, bout, avg)
    return tuple(jnp.asarray(a) for a in arrays)


@jax.jit
def policy_value_forward(packed, inp, param_w, param_b):
    wh1w, wh1b, wh23, hbias, w1s, w1m, bmain, w2bd, wout, bout, avg = packed
    B = inp.shape[0]
    pw = param_w.reshape(-1, LS + 1).astype(jnp.float32)
    pb = param_b.reshape(-1, LS + 1).astype(jnp.float32)
    inp = inp.astype(jnp.float32)

    out = pl.pallas_call(
        _fused_kernel,
        out_shape=jax.ShapeDtypeStruct((B, 2), jnp.float32),
        in_specs=[pl.BlockSpec(memory_space=pltpu.MemorySpace.VMEM)] * 14,
        out_specs=pl.BlockSpec(memory_space=pltpu.MemorySpace.VMEM),
    )(pw, pb, inp, avg,
      wh1w, wh1b, wh23, hbias, w1s, w1m, bmain, w2bd, wout, bout)

    return out[:, 0:1], out[:, 1:2]


def reference_forward(params, inp, param_w, param_b, action_dim, rep_dim):
    """Pure-JAX transcription of the PyTorch forward (for verification)."""
    hi = jax.lax.Precision.HIGHEST
    lin = lambda x, n: jnp.dot(x, params[n][0].T, precision=hi) + params[n][1]
    lrelu = lambda x: jnp.where(x > 0, x, NEG_SLOPE * x)
    rw = param_w.reshape(-1, LS + 1)
    rb = param_b.reshape(-1, LS + 1)

    def head(pw_names, pb_names, w1, w2, wout):
        op = lrelu(lin(rw, pw_names[0]))
        op = lrelu(lin(op, pw_names[1]))
        op = lin(op, pw_names[2]).reshape(-1, action_dim, rep_dim)
        ob = lrelu(lin(rb, pb_names[0]))
        ob = lrelu(lin(ob, pb_names[1]))
        ob = lin(ob, pb_names[2]).reshape(-1, action_dim, rep_dim)
        o = jnp.mean(jnp.concatenate([ob, op], -1), axis=1)
        ci = jnp.concatenate([inp, o], axis=1)
        h = lrelu(lin(ci, w1))
        h = lrelu(lin(h, w2))
        return lin(h, wout)

    out1 = head(('policy_w_l1', 'policy_w_l2', 'policy_w_l3'),
                ('policy_b_l1', 'policy_b_l2', 'policy_b_l3'),
                'w_l1', 'w_l2', 'w_out')
    out2 = head(('policy_w_l4', 'policy_w_l5', 'policy_w_l6'),
                ('policy_b_l4', 'policy_b_l5', 'policy_b_l6'),
                'w_l3', 'w_l4', 'w_out_2')
    return out1, out2


if __name__ == "__main__":
    state_dim, action_dim, rep_dim = 12, 4, 32
    B = 2
    policy_size = LS * action_dim + action_dim   # action_dim * (ls + 1)

    key = jax.random.PRNGKey(0)
    kp, ki, kw, kb = jax.random.split(key, 4)
    params = init_params(kp, state_dim, action_dim, rep_dim)
    inp = jax.random.normal(ki, (B, state_dim + action_dim), jnp.float32)
    param_w = jax.random.normal(kw, (B, policy_size), jnp.float32)
    param_b = jax.random.normal(kb, (B, policy_size), jnp.float32)

    # One-time weight packing (hoisted out of the forward path).
    packed = prepare_packed_weights(params, state_dim, action_dim, rep_dim, B)

    out_1, out_2 = policy_value_forward(packed, inp, param_w, param_b)
    jax.block_until_ready((out_1, out_2))

    ref_1, ref_2 = reference_forward(params, inp, param_w, param_b, action_dim, rep_dim)
    np.testing.assert_allclose(np.asarray(out_1), np.asarray(ref_1), rtol=5e-3, atol=5e-3)
    np.testing.assert_allclose(np.asarray(out_2), np.asarray(ref_2), rtol=5e-3, atol=5e-3)

    print("KERNEL_OK")
</pallas_src>

<mosaic_0001>
module attributes {stable_mosaic.version = 11 : i64} {
  func.func @_fused_kernel(%arg0: memref<8x257xf32, #tpu.memory_space<vmem>>, %arg1: memref<8x257xf32, #tpu.memory_space<vmem>>, %arg2: memref<2x16xf32, #tpu.memory_space<vmem>>, %arg3: memref<2x8xf32, #tpu.memory_space<vmem>>, %arg4: memref<257x128xf32, #tpu.memory_space<vmem>>, %arg5: memref<257x128xf32, #tpu.memory_space<vmem>>, %arg6: memref<2x128x128xf32, #tpu.memory_space<vmem>>, %arg7: memref<3x128xf32, #tpu.memory_space<vmem>>, %arg8: memref<16x512xf32, #tpu.memory_space<vmem>>, %arg9: memref<128x512xf32, #tpu.memory_space<vmem>>, %arg10: memref<2x512xf32, #tpu.memory_space<vmem>>, %arg11: memref<512x512xf32, #tpu.memory_space<vmem>>, %arg12: memref<512x2xf32, #tpu.memory_space<vmem>>, %arg13: memref<1x2xf32, #tpu.memory_space<vmem>>, %arg14: memref<2x2xf32, #tpu.memory_space<vmem>>) attributes {dimension_semantics = [], scalar_prefetch = 0 : i64, scratch_operands = 0 : i64, tpu.core_type = #tpu.core_type<tc>} {
    %c0 = arith.constant 0 : index
    %c0_0 = arith.constant 0 : index
    %0 = vector.load %arg0[%c0, %c0_0] : memref<8x257xf32, #tpu.memory_space<vmem>>, vector<8x257xf32>
    %c0_1 = arith.constant 0 : index
    %c0_2 = arith.constant 0 : index
    %1 = vector.load %arg4[%c0_1, %c0_2] : memref<257x128xf32, #tpu.memory_space<vmem>>, vector<257x128xf32>
    %cst = arith.constant dense<0.000000e+00> : vector<8x128xf32>
    %2 = tpu.matmul %0, %1, %cst {dimension_numbers = #tpu.dot_dimension_numbers<[1], [0], [0], [1], [0, 0, 1, 1], [], []>} : vector<8x257xf32>, vector<257x128xf32>, vector<8x128xf32> -> vector<8x128xf32>
    %c0_3 = arith.constant 0 : index
    %c0_4 = arith.constant 0 : index
    %3 = vector.load %arg1[%c0_3, %c0_4] : memref<8x257xf32, #tpu.memory_space<vmem>>, vector<8x257xf32>
    %c0_5 = arith.constant 0 : index
    %c0_6 = arith.constant 0 : index
    %4 = vector.load %arg5[%c0_5, %c0_6] : memref<257x128xf32, #tpu.memory_space<vmem>>, vector<257x128xf32>
    %cst_7 = arith.constant dense<0.000000e+00> : vector<8x128xf32>
    %5 = tpu.matmul %3, %4, %cst_7 {dimension_numbers = #tpu.dot_dimension_numbers<[1], [0], [0], [1], [0, 0, 1, 1], [], []>} : vector<8x257xf32>, vector<257x128xf32>, vector<8x128xf32> -> vector<8x128xf32>
    %6 = arith.addf %2, %5 : vector<8x128xf32>
    %c0_8 = arith.constant 0 : index
    %c0_9 = arith.constant 0 : index
    %7 = vector.load %arg7[%c0_8, %c0_9] : memref<3x128xf32, #tpu.memory_space<vmem>>, vector<1x128xf32>
    %8 = vector.broadcast %7 : vector<1x128xf32> to vector<8x128xf32>
    %9 = arith.addf %6, %8 : vector<8x128xf32>
    %cst_10 = arith.constant 0.000000e+00 : f32
    %10 = vector.broadcast %cst_10 : f32 to vector<8x128xf32>
    %11 = arith.cmpf ogt, %9, %10 : vector<8x128xf32>
    %cst_11 = arith.constant 0.00999999977 : f32
    %12 = vector.broadcast %cst_11 : f32 to vector<8x128xf32>
    %13 = arith.mulf %12, %9 : vector<8x128xf32>
    %14 = arith.select %11, %9, %13 : vector<8x128xi1>, vector<8x128xf32>
    %c0_12 = arith.constant 0 : index
    %c0_13 = arith.constant 0 : index
    %c0_14 = arith.constant 0 : index
    %15 = vector.load %arg6[%c0_12, %c0_13, %c0_14] : memref<2x128x128xf32, #tpu.memory_space<vmem>>, vector<1x128x128xf32>
    %16 = vector.shape_cast %15 : vector<1x128x128xf32> to vector<128x128xf32>
    %cst_15 = arith.constant dense<0.000000e+00> : vector<8x128xf32>
    %17 = tpu.matmul %14, %16, %cst_15 {dimension_numbers = #tpu.dot_dimension_numbers<[1], [0], [0], [1], [0, 0, 1, 1], [], []>} : vector<8x128xf32>, vector<128x128xf32>, vector<8x128xf32> -> vector<8x128xf32>
    %c1 = arith.constant 1 : index
    %c0_16 = arith.constant 0 : index
    %18 = vector.load %arg7[%c1, %c0_16] : memref<3x128xf32, #tpu.memory_space<vmem>>, vector<1x128xf32>
    %19 = vector.broadcast %18 : vector<1x128xf32> to vector<8x128xf32>
    %20 = arith.addf %17, %19 : vector<8x128xf32>
    %cst_17 = arith.constant 0.000000e+00 : f32
    %21 = vector.broadcast %cst_17 : f32 to vector<8x128xf32>
    %22 = arith.cmpf ogt, %20, %21 : vector<8x128xf32>
    %cst_18 = arith.constant 0.00999999977 : f32
    %23 = vector.broadcast %cst_18 : f32 to vector<8x128xf32>
    %24 = arith.mulf %23, %20 : vector<8x128xf32>
    %25 = arith.select %22, %20, %24 : vector<8x128xi1>, vector<8x128xf32>
    %c1_19 = arith.constant 1 : index
    %c0_20 = arith.constant 0 : index
    %c0_21 = arith.constant 0 : index
    %26 = vector.load %arg6[%c1_19, %c0_20, %c0_21] : memref<2x128x128xf32, #tpu.memory_space<vmem>>, vector<1x128x128xf32>
    %27 = vector.shape_cast %26 : vector<1x128x128xf32> to vector<128x128xf32>
    %cst_22 = arith.constant dense<0.000000e+00> : vector<8x128xf32>
    %28 = tpu.matmul %25, %27, %cst_22 {dimension_numbers = #tpu.dot_dimension_numbers<[1], [0], [0], [1], [0, 0, 1, 1], [], []>} : vector<8x128xf32>, vector<128x128xf32>, vector<8x128xf32> -> vector<8x128xf32>
    %c2 = arith.constant 2 : index
    %c0_23 = arith.constant 0 : index
    %29 = vector.load %arg7[%c2, %c0_23] : memref<3x128xf32, #tpu.memory_space<vmem>>, vector<1x128xf32>
    %30 = vector.broadcast %29 : vector<1x128xf32> to vector<8x128xf32>
    %31 = arith.addf %28, %30 : vector<8x128xf32>
    %c0_24 = arith.constant 0 : index
    %c0_25 = arith.constant 0 : index
    %32 = vector.load %arg3[%c0_24, %c0_25] : memref<2x8xf32, #tpu.memory_space<vmem>>, vector<2x8xf32>
    %cst_26 = arith.constant dense<0.000000e+00> : vector<2x128xf32>
    %33 = tpu.matmul %32, %31, %cst_26 {dimension_numbers = #tpu.dot_dimension_numbers<[1], [0], [0], [1], [0, 0, 1, 1], [], []>} : vector<2x8xf32>, vector<8x128xf32>, vector<2x128xf32> -> vector<2x128xf32>
    %c0_27 = arith.constant 0 : index
    %c0_28 = arith.constant 0 : index
    %34 = vector.load %arg2[%c0_27, %c0_28] : memref<2x16xf32, #tpu.memory_space<vmem>>, vector<2x16xf32>
    %c0_29 = arith.constant 0 : index
    %c0_30 = arith.constant 0 : index
    %35 = vector.load %arg8[%c0_29, %c0_30] : memref<16x512xf32, #tpu.memory_space<vmem>>, vector<16x512xf32>
    %cst_31 = arith.constant dense<0.000000e+00> : vector<2x512xf32>
    %36 = tpu.matmul %34, %35, %cst_31 {dimension_numbers = #tpu.dot_dimension_numbers<[1], [0], [0], [1], [0, 0, 1, 1], [], []>} : vector<2x16xf32>, vector<16x512xf32>, vector<2x512xf32> -> vector<2x512xf32>
    %c0_32 = arith.constant 0 : index
    %c0_33 = arith.constant 0 : index
    %37 = vector.load %arg9[%c0_32, %c0_33] : memref<128x512xf32, #tpu.memory_space<vmem>>, vector<128x512xf32>
    %cst_34 = arith.constant dense<0.000000e+00> : vector<2x512xf32>
    %38 = tpu.matmul %33, %37, %cst_34 {dimension_numbers = #tpu.dot_dimension_numbers<[1], [0], [0], [1], [0, 0, 1, 1], [], []>} : vector<2x128xf32>, vector<128x512xf32>, vector<2x512xf32> -> vector<2x512xf32>
    %39 = arith.addf %36, %38 : vector<2x512xf32>
    %c0_35 = arith.constant 0 : index
    %c0_36 = arith.constant 0 : index
    %40 = vector.load %arg10[%c0_35, %c0_36] : memref<2x512xf32, #tpu.memory_space<vmem>>, vector<1x512xf32>
    %41 = vector.broadcast %40 : vector<1x512xf32> to vector<2x512xf32>
    %42 = arith.addf %39, %41 : vector<2x512xf32>
    %cst_37 = arith.constant 0.000000e+00 : f32
    %43 = vector.broadcast %cst_37 : f32 to vector<2x512xf32>
    %44 = arith.cmpf ogt, %42, %43 : vector<2x512xf32>
    %cst_38 = arith.constant 0.00999999977 : f32
    %45 = vector.broadcast %cst_38 : f32 to vector<2x512xf32>
    %46 = arith.mulf %45, %42 : vector<2x512xf32>
    %47 = arith.select %44, %42, %46 : vector<2x512xi1>, vector<2x512xf32>
    %c0_39 = arith.constant 0 : index
    %c0_40 = arith.constant 0 : index
    %48 = vector.load %arg11[%c0_39, %c0_40] : memref<512x512xf32, #tpu.memory_space<vmem>>, vector<512x512xf32>
    %cst_41 = arith.constant dense<0.000000e+00> : vector<2x512xf32>
    %49 = tpu.matmul %47, %48, %cst_41 {dimension_numbers = #tpu.dot_dimension_numbers<[1], [0], [0], [1], [0, 0, 1, 1], [], []>} : vector<2x512xf32>, vector<512x512xf32>, vector<2x512xf32> -> vector<2x512xf32>
    %c1_42 = arith.constant 1 : index
    %c0_43 = arith.constant 0 : index
    %50 = vector.load %arg10[%c1_42, %c0_43] : memref<2x512xf32, #tpu.memory_space<vmem>>, vector<1x512xf32>
    %51 = vector.broadcast %50 : vector<1x512xf32> to vector<2x512xf32>
    %52 = arith.addf %49, %51 : vector<2x512xf32>
    %cst_44 = arith.constant 0.000000e+00 : f32
    %53 = vector.broadcast %cst_44 : f32 to vector<2x512xf32>
    %54 = arith.cmpf ogt, %52, %53 : vector<2x512xf32>
    %cst_45 = arith.constant 0.00999999977 : f32
    %55 = vector.broadcast %cst_45 : f32 to vector<2x512xf32>
    %56 = arith.mulf %55, %52 : vector<2x512xf32>
    %57 = arith.select %54, %52, %56 : vector<2x512xi1>, vector<2x512xf32>
    %c0_46 = arith.constant 0 : index
    %c0_47 = arith.constant 0 : index
    %58 = vector.load %arg12[%c0_46, %c0_47] : memref<512x2xf32, #tpu.memory_space<vmem>>, vector<512x2xf32>
    %cst_48 = arith.constant dense<0.000000e+00> : vector<2x2xf32>
    %59 = tpu.matmul %57, %58, %cst_48 {dimension_numbers = #tpu.dot_dimension_numbers<[1], [0], [0], [1], [0, 0, 1, 1], [], []>} : vector<2x512xf32>, vector<512x2xf32>, vector<2x2xf32> -> vector<2x2xf32>
    %c0_49 = arith.constant 0 : index
    %c0_50 = arith.constant 0 : index
    %60 = vector.load %arg13[%c0_49, %c0_50] : memref<1x2xf32, #tpu.memory_space<vmem>>, vector<1x2xf32>
    %61 = vector.broadcast %60 : vector<1x2xf32> to vector<2x2xf32>
    %62 = arith.addf %59, %61 : vector<2x2xf32>
    %c0_51 = arith.constant 0 : index
    %c0_52 = arith.constant 0 : index
    %63 = vector.load %arg14[%c0_51, %c0_52] : memref<2x2xf32, #tpu.memory_space<vmem>>, vector<2x2xf32>
    tpu.vector_store %arg14[%c0_51, %c0_52], %62 {strides = array<i32>} : memref<2x2xf32, #tpu.memory_space<vmem>>, vector<2x2xf32>,
    return
  }
}

</mosaic_0001>

<llo_original>
// kernel: policy_value_forward.1
$region0: #{policy_value_forward.1}
  #allocation0 [shape = 'u32[]', space=smem, size = 0x4, offset = 0x4, fixed_abs, tag = 'smem constant byte address 0x4 - core index']
  #allocation1 [shape = 'u32[144,128]{1,0:T(1,128)}', space=vmem, size = 0x12000, scoped, tag = 'internal scratch']
  %s0 = inlined_call_operand.vmem [shape: f32[8,257], index: 0, kind: input, shape index: {}]
  %s1 = inlined_call_operand.vmem [shape: f32[8,257], index: 1, kind: input, shape index: {}]
  %s2 = inlined_call_operand.hbm [shape: f32[2,16], index: 2, kind: input, shape index: {}]
  %s3 = inlined_call_operand.hbm [shape: f32[2,8], index: 3, kind: input, shape index: {}]
  %s4 = inlined_call_operand.hbm [shape: f32[257,128], index: 4, kind: input, shape index: {}]
  %s5 = inlined_call_operand.hbm [shape: f32[257,128], index: 5, kind: input, shape index: {}]
  %s6 = inlined_call_operand.hbm [shape: f32[2,128,128], index: 6, kind: input, shape index: {}]
  %s7 = inlined_call_operand.vmem [shape: f32[3,128], index: 7, kind: input, shape index: {}]
  %s8 = inlined_call_operand.vmem [shape: f32[16,512], index: 8, kind: input, shape index: {}]
  %s9 = inlined_call_operand.vmem [shape: f32[128,512], index: 9, kind: input, shape index: {}]
  %s10 = inlined_call_operand.hbm [shape: f32[2,512], index: 10, kind: input, shape index: {}]
  %s11 = inlined_call_operand.hbm [shape: f32[512,512], index: 11, kind: input, shape index: {}]
  %s12 = inlined_call_operand.vmem [shape: f32[512,2], index: 12, kind: input, shape index: {}]
  %s13 = inlined_call_operand.vmem [shape: f32[1,2], index: 13, kind: input, shape index: {}]
  %s14 = inlined_call_operand.vmem [shape: f32[2,2], index: 14, kind: output, shape index: {}]
  %s15 = sld [smem:[#allocation0]]
  $region94: #{policy_value_forward.1} parent=0
    _
  %s17 = ssub.s32 1, %s15
  %s18 = scalar_select 0, %s17, %s15
  $region1: #{policy_value_forward.1} parent=0
    #allocation2 [shape = 'u8[1024]{0}', space=vmem, size = 0x400, scoped, tag = 'input window, operand 2, single buffered']
    #allocation3 [shape = 's32[1]{0}', space=sflag, size = 0x4, scoped, tag = 'scoped memory for policy_value_forward.1']
    #allocation4 [shape = 'u8[1024]{0}', space=vmem, size = 0x400, scoped, tag = 'input window, operand 3, single buffered']
    #allocation5 [shape = 's32[1]{0}', space=sflag, size = 0x4, scoped, tag = 'scoped memory for policy_value_forward.1']
    #allocation6 [shape = 'u8[135168]{0}', space=vmem, size = 0x21000, scoped, tag = 'input window, operand 4, single buffered']
    #allocation7 [shape = 'u8[135168]{0}', space=vmem, size = 0x21000, scoped, tag = 'input window, operand 5, single buffered']
    #allocation8 [shape = 's32[1]{0}', space=sflag, size = 0x4, scoped, tag = 'scoped memory for policy_value_forward.1']
    #allocation9 [shape = 'u8[131072]{0}', space=vmem, size = 0x20000, scoped, tag = 'input window, operand 6, single buffered']
    #allocation10 [shape = 'u8[4096]{0}', space=vmem, size = 0x1000, scoped, tag = 'input window, operand 10, single buffered']
    #allocation11 [shape = 's32[1]{0}', space=sflag, size = 0x4, scoped, tag = 'scoped memory for policy_value_forward.1']
    #allocation12 [shape = 'u8[1048576]{0}', space=vmem, size = 0x100000, scoped, tag = 'input window, operand 11, single buffered']
    %19 = vsyncpa [#allocation3], 0
    %20 = vsyncpa [#allocation5], 0
    %21 = vsyncpa [#allocation8], 0
    %22 = vsyncpa [#allocation11], 0
    // Predicated region
    $region2: #{policy_value_forward.1} parent=1 // pred_check
      _
    $region3: #{policy_value_forward.1} parent=1 // pred_check_branch
      %24 = sbr.rel (0) target = $region5
    $region4: #{policy_value_forward.1} parent=1 // pred_region
      _
    $region5: #{policy_value_forward.1} parent=1 // pred_fallthru
      _
    // Predicated region
    $region6: #{policy_value_forward.1} parent=1 // pred_check
      _
    $region7: #{policy_value_forward.1} parent=1 // pred_check_branch
      %26 = sbr.rel (0) target = $region9
    $region8: #{policy_value_forward.1} parent=1 // pred_region
      _
    $region9: #{policy_value_forward.1} parent=1 // pred_fallthru
      _
    // Predicated region
    $region10: #{policy_value_forward.1} parent=1 // pred_check
      _
    $region11: #{policy_value_forward.1} parent=1 // pred_check_branch
      %28 = sbr.rel (0) target = $region13
    $region12: #{policy_value_forward.1} parent=1 // pred_region
      %s30 = ssub.s32 32, 32
      %31 = vsyncadd [#allocation3], %s30
      %s33 = sshll.u32 [#allocation2], 4
      %s34 = int_to_ptr.vmem [resolvable:$true] %s33
      %36 = dma.hbm_to_vmem [thread:$0]  %s2, 32, %s34, [#allocation3]
    $region13: #{policy_value_forward.1} parent=1 // pred_fallthru
      _
    // Predicated region
    $region14: #{policy_value_forward.1} parent=1 // pred_check
      _
    $region15: #{policy_value_forward.1} parent=1 // pred_check_branch
      %38 = sbr.rel (0) target = $region17
    $region16: #{policy_value_forward.1} parent=1 // pred_region
      %s40 = ssub.s32 32, 32
      %41 = vsyncadd [#allocation5], %s40
      %s43 = sshll.u32 [#allocation4], 4
      %s44 = int_to_ptr.vmem [resolvable:$true] %s43
      %46 = dma.hbm_to_vmem [thread:$0]  %s3, 32, %s44, [#allocation5]
    $region17: #{policy_value_forward.1} parent=1 // pred_fallthru
      _
    // Predicated region
    $region18: #{policy_value_forward.1} parent=1 // pred_check
      _
    $region19: #{policy_value_forward.1} parent=1 // pred_check_branch
      %48 = sbr.rel (0) target = $region21
    $region20: #{policy_value_forward.1} parent=1 // pred_region
      %s50 = ssub.s32 4224, 4224
      %51 = vsyncadd [#allocation5], %s50
      %s52 = sshll.u32 [#allocation6], 4
      %s53 = int_to_ptr.vmem [resolvable:$true] %s52
      %58 = dma.hbm_to_vmem [thread:$0]  %s4, 4224, %s53, [#allocation5], 128, 128, 8
    $region21: #{policy_value_forward.1} parent=1 // pred_fallthru
      _
    // Predicated region
    $region22: #{policy_value_forward.1} parent=1 // pred_check
      _
    $region23: #{policy_value_forward.1} parent=1 // pred_check_branch
      %60 = sbr.rel (0) target = $region25
    $region24: #{policy_value_forward.1} parent=1 // pred_region
      %s62 = ssub.s32 4224, 4224
      %63 = vsyncadd [#allocation8], %s62
      %s64 = sshll.u32 [#allocation7], 4
      %s65 = int_to_ptr.vmem [resolvable:$true] %s64
      %70 = dma.hbm_to_vmem [thread:$0]  %s5, 4224, %s65, [#allocation8], 128, 128, 8
    $region25: #{policy_value_forward.1} parent=1 // pred_fallthru
      _
    // Predicated region
    $region26: #{policy_value_forward.1} parent=1 // pred_check
      _
    $region27: #{policy_value_forward.1} parent=1 // pred_check_branch
      %72 = sbr.rel (0) target = $region29
    $region28: #{policy_value_forward.1} parent=1 // pred_region
      %s74 = ssub.s32 4096, 4096
      %75 = vsyncadd [#allocation8], %s74
      %s76 = sshll.u32 [#allocation9], 4
      %s77 = int_to_ptr.vmem [resolvable:$true] %s76
      %82 = dma.hbm_to_vmem [thread:$0]  %s6, 4096, %s77, [#allocation8], 128, 128, 8
    $region29: #{policy_value_forward.1} parent=1 // pred_fallthru
      _
    // Predicated region
    $region30: #{policy_value_forward.1} parent=1 // pred_check
      _
    $region31: #{policy_value_forward.1} parent=1 // pred_check_branch
      %84 = sbr.rel (0) target = $region33
    $region32: #{policy_value_forward.1} parent=1 // pred_region
      _
    $region33: #{policy_value_forward.1} parent=1 // pred_fallthru
      _
    // Predicated region
    $region34: #{policy_value_forward.1} parent=1 // pred_check
      _
    $region35: #{policy_value_forward.1} parent=1 // pred_check_branch
      %86 = sbr.rel (0) target = $region37
    $region36: #{policy_value_forward.1} parent=1 // pred_region
      _
    $region37: #{policy_value_forward.1} parent=1 // pred_fallthru
      _
    // Predicated region
    $region38: #{policy_value_forward.1} parent=1 // pred_check
      _
    $region39: #{policy_value_forward.1} parent=1 // pred_check_branch
      %88 = sbr.rel (0) target = $region41
    $region40: #{policy_value_forward.1} parent=1 // pred_region
      _
    $region41: #{policy_value_forward.1} parent=1 // pred_fallthru
      _
    // Predicated region
    $region42: #{policy_value_forward.1} parent=1 // pred_check
      _
    $region43: #{policy_value_forward.1} parent=1 // pred_check_branch
      %90 = sbr.rel (0) target = $region45
    $region44: #{policy_value_forward.1} parent=1 // pred_region
      %s92 = ssub.s32 128, 128
      %93 = vsyncadd [#allocation11], %s92
      %s95 = sshll.u32 [#allocation10], 4
      %s96 = int_to_ptr.vmem [resolvable:$true] %s95
      %98 = dma.hbm_to_vmem [thread:$0]  %s10, 128, %s96, [#allocation11]
    $region45: #{policy_value_forward.1} parent=1 // pred_fallthru
      _
    // Predicated region
    $region46: #{policy_value_forward.1} parent=1 // pred_check
      _
    $region47: #{policy_value_forward.1} parent=1 // pred_check_branch
      %100 = sbr.rel (0) target = $region49
    $region48: #{policy_value_forward.1} parent=1 // pred_region
      %s102 = ssub.s32 32768, 32768
      %103 = vsyncadd [#allocation11], %s102
      %s104 = sshll.u32 [#allocation12], 4
      %s105 = int_to_ptr.vmem [resolvable:$true] %s104
      %110 = dma.hbm_to_vmem [thread:$0]  %s11, 32768, %s105, [#allocation11], 512, 512, 32
    $region49: #{policy_value_forward.1} parent=1 // pred_fallthru
      _
    // Predicated region
    $region50: #{policy_value_forward.1} parent=1 // pred_check
      _
    $region51: #{policy_value_forward.1} parent=1 // pred_check_branch
      %112 = sbr.rel (0) target = $region53
    $region52: #{policy_value_forward.1} parent=1 // pred_region
      _
    $region53: #{policy_value_forward.1} parent=1 // pred_fallthru
      _
    // Predicated region
    $region54: #{policy_value_forward.1} parent=1 // pred_check
      _
    $region55: #{policy_value_forward.1} parent=1 // pred_check_branch
      %114 = sbr.rel (0) target = $region57
    $region56: #{policy_value_forward.1} parent=1 // pred_region
      _
    $region57: #{policy_value_forward.1} parent=1 // pred_fallthru
      _
    // Predicated region
    $region58: #{policy_value_forward.1} parent=1 // pred_check
      _
    $region59: #{policy_value_forward.1} parent=1 // pred_check_branch
      %116 = sbr.rel (0) target = $region61
    $region60: #{policy_value_forward.1} parent=1 // pred_region
      %117 = dma.done [#allocation3], 32
    $region61: #{policy_value_forward.1} parent=1 // pred_fallthru
      _
    // Predicated region
    $region62: #{policy_value_forward.1} parent=1 // pred_check
      _
    $region63: #{policy_value_forward.1} parent=1 // pred_check_branch
      %119 = sbr.rel (0) target = $region65
    $region64: #{policy_value_forward.1} parent=1 // pred_region
      %120 = dma.done [#allocation5], 32
    $region65: #{policy_value_forward.1} parent=1 // pred_fallthru
      _
    // Predicated region
    $region66: #{policy_value_forward.1} parent=1 // pred_check
      _
    $region67: #{policy_value_forward.1} parent=1 // pred_check_branch
      %122 = sbr.rel (0) target = $region69
    $region68: #{policy_value_forward.1} parent=1 // pred_region
      %123 = dma.done [#allocation5], 4224
    $region69: #{policy_value_forward.1} parent=1 // pred_fallthru
      _
    // Predicated region
    $region70: #{policy_value_forward.1} parent=1 // pred_check
      _
    $region71: #{policy_value_forward.1} parent=1 // pred_check_branch
      %125 = sbr.rel (0) target = $region73
    $region72: #{policy_value_forward.1} parent=1 // pred_region
      %126 = dma.done [#allocation8], 4224
    $region73: #{policy_value_forward.1} parent=1 // pred_fallthru
      _
    // Predicated region
    $region74: #{policy_value_forward.1} parent=1 // pred_check
      _
    $region75: #{policy_value_forward.1} parent=1 // pred_check_branch
      %128 = sbr.rel (0) target = $region77
    $region76: #{policy_value_forward.1} parent=1 // pred_region
      %129 = dma.done [#allocation8], 4096
    $region77: #{policy_value_forward.1} parent=1 // pred_fallthru
      _
    // Predicated region
    $region78: #{policy_value_forward.1} parent=1 // pred_check
      _
    $region79: #{policy_value_forward.1} parent=1 // pred_check_branch
      %131 = sbr.rel (0) target = $region81
    $region80: #{policy_value_forward.1} parent=1 // pred_region
      %132 = dma.done [#allocation11], 128
    $region81: #{policy_value_forward.1} parent=1 // pred_fallthru
      _
    // Predicated region
    $region82: #{policy_value_forward.1} parent=1 // pred_check
      _
    $region83: #{policy_value_forward.1} parent=1 // pred_check_branch
      %134 = sbr.rel (0) target = $region85
    $region84: #{policy_value_forward.1} parent=1 // pred_region
      %135 = dma.done [#allocation11], 32768
    $region85: #{policy_value_forward.1} parent=1 // pred_fallthru
      _
    %v136 = vld [vmem:[%s0] sm:$0xff]
    %v137 = vld [vmem:[%s0 + $0x8] sm:$0xff]
    %v138 = vld [vmem:[%s0 + $0x10] sm:$0xff]
    %v139 = vld [vmem:[#allocation6] sm:$0xff]
    %v140 = vld [vmem:[#allocation6 + $0x8] sm:$0xff]
    %v141 = vld [vmem:[#allocation6 + $0x10] sm:$0xff]
    %v142 = vld [vmem:[#allocation6 + $0x18] sm:$0xff]
    %v143 = vld [vmem:[#allocation6 + $0x20] sm:$0xff]
    %v144 = vld [vmem:[#allocation6 + $0x28] sm:$0xff]
    %v145 = vld [vmem:[#allocation6 + $0x30] sm:$0xff]
    %v146 = vld [vmem:[#allocation6 + $0x38] sm:$0xff]
    %v147 = vld [vmem:[#allocation6 + $0x40] sm:$0xff]
    %v148 = vld [vmem:[#allocation6 + $0x48] sm:$0xff]
    %v149 = vld [vmem:[#allocation6 + $0x50] sm:$0xff]
    %v150 = vld [vmem:[#allocation6 + $0x58] sm:$0xff]
    %v151 = vld [vmem:[#allocation6 + $0x60] sm:$0xff]
    %v152 = vld [vmem:[#allocation6 + $0x68] sm:$0xff]
    %v153 = vld [vmem:[#allocation6 + $0x70] sm:$0xff]
    %v154 = vld [vmem:[#allocation6 + $0x78] sm:$0xff]
    %v155 = vld [vmem:[#allocation6 + $0x80] sm:$0xff]
    %v156 = vld [vmem:[#allocation6 + $0x88] sm:$0xff]
    %v157 = vld [vmem:[#allocation6 + $0x90] sm:$0xff]
    %v158 = vld [vmem:[#allocation6 + $0x98] sm:$0xff]
    %v159 = vld [vmem:[#allocation6 + $0xa0] sm:$0xff]
    %v160 = vld [vmem:[#allocation6 + $0xa8] sm:$0xff]
    %v161 = vld [vmem:[#allocation6 + $0xb0] sm:$0xff]
    %v162 = vld [vmem:[#allocation6 + $0xb8] sm:$0xff]
    %v163 = vld [vmem:[#allocation6 + $0xc0] sm:$0xff]
    %v164 = vld [vmem:[#allocation6 + $0xc8] sm:$0xff]
    %v165 = vld [vmem:[#allocation6 + $0xd0] sm:$0xff]
    %v166 = vld [vmem:[#allocation6 + $0xd8] sm:$0xff]
    %v167 = vld [vmem:[#allocation6 + $0xe0] sm:$0xff]
    %v168 = vld [vmem:[#allocation6 + $0xe8] sm:$0xff]
    %v169 = vld [vmem:[#allocation6 + $0xf0] sm:$0xff]
    %v170 = vld [vmem:[#allocation6 + $0xf8] sm:$0xff]
    %v171 = vld [vmem:[#allocation6 + $0x100] sm:$0x1]
    %v172 = vld [vmem:[%s1] sm:$0xff]
    %v173 = vld [vmem:[%s1 + $0x8] sm:$0xff]
    %v174 = vld [vmem:[%s1 + $0x10] sm:$0xff]
    %v175 = vld [vmem:[#allocation7] sm:$0xff]
    %v176 = vld [vmem:[#allocation7 + $0x8] sm:$0xff]
    %v177 = vld [vmem:[#allocation7 + $0x10] sm:$0xff]
    %v178 = vld [vmem:[#allocation7 + $0x18] sm:$0xff]
    %v179 = vld [vmem:[#allocation7 + $0x20] sm:$0xff]
    %v180 = vld [vmem:[#allocation7 + $0x28] sm:$0xff]
    %v181 = vld [vmem:[#allocation7 + $0x30] sm:$0xff]
    %v182 = vld [vmem:[#allocation7 + $0x38] sm:$0xff]
    %v183 = vld [vmem:[#allocation7 + $0x40] sm:$0xff]
    %v184 = vld [vmem:[#allocation7 + $0x48] sm:$0xff]
    %v185 = vld [vmem:[#allocation7 + $0x50] sm:$0xff]
    %v186 = vld [vmem:[#allocation7 + $0x58] sm:$0xff]
    %v187 = vld [vmem:[#allocation7 + $0x60] sm:$0xff]
    %v188 = vld [vmem:[#allocation7 + $0x68] sm:$0xff]
    %v189 = vld [vmem:[#allocation7 + $0x70] sm:$0xff]
    %v190 = vld [vmem:[#allocation7 + $0x78] sm:$0xff]
    %v191 = vld [vmem:[#allocation7 + $0x80] sm:$0xff]
    %v192 = vld [vmem:[#allocation7 + $0x88] sm:$0xff]
    %v193 = vld [vmem:[#allocation7 + $0x90] sm:$0xff]
    %v194 = vld [vmem:[#allocation7 + $0x98] sm:$0xff]
    %v195 = vld [vmem:[#allocation7 + $0xa0] sm:$0xff]
    %v196 = vld [vmem:[#allocation7 + $0xa8] sm:$0xff]
    %v197 = vld [vmem:[#allocation7 + $0xb0] sm:$0xff]
    %v198 = vld [vmem:[#allocation7 + $0xb8] sm:$0xff]
    %v199 = vld [vmem:[#allocation7 + $0xc0] sm:$0xff]
    %v200 = vld [vmem:[#allocation7 + $0xc8] sm:$0xff]
    %v201 = vld [vmem:[#allocation7 + $0xd0] sm:$0xff]
    %v202 = vld [vmem:[#allocation7 + $0xd8] sm:$0xff]
    %v203 = vld [vmem:[#allocation7 + $0xe0] sm:$0xff]
    %v204 = vld [vmem:[#allocation7 + $0xe8] sm:$0xff]
    %v205 = vld [vmem:[#allocation7 + $0xf0] sm:$0xff]
    %v206 = vld [vmem:[#allocation7 + $0xf8] sm:$0xff]
    %v207 = vld [vmem:[#allocation7 + $0x100] sm:$0x1]
    %vm208 = vcmask 7168
    %v210 = vsel %vm208, %v174, 0
    %vm212 = vcmask 1040384
    %v214 = vsel %vm212, %v207, 0
    %216 = vmatprep.subr.mxu0 0.0
    %217 = vmatpush1.msra.mxu0 %v190
    %218 = vmatprep.subr.mxu0 0.0
    %219 = vmatpush1.msra.mxu0 %v189
    %220 = vmatprep.subr.mxu0 0.0
    %221 = vmatpush1.msra.mxu0 %v188
    %222 = vmatprep.subr.mxu0 0.0
    %223 = vmatpush1.msra.mxu0 %v187
    %224 = vmatprep.subr.mxu0 0.0
    %225 = vmatpush1.msra.mxu0 %v186
    %226 = vmatprep.subr.mxu0 0.0
    %227 = vmatpush1.msra.mxu0 %v185
    %228 = vmatprep.subr.mxu0 0.0
    %229 = vmatpush1.msra.mxu0 %v184
    %230 = vmatprep.subr.mxu0 0.0
    %231 = vmatpush1.msra.mxu0 %v183
    %232 = vmatprep.subr.mxu0 0.0
    %233 = vmatpush1.msra.mxu0 %v182
    %234 = vmatprep.subr.mxu0 0.0
    %235 = vmatpush1.msra.mxu0 %v181
    %236 = vmatprep.subr.mxu0 0.0
    %237 = vmatpush1.msra.mxu0 %v180
    %238 = vmatprep.subr.mxu0 0.0
    %239 = vmatpush1.msra.mxu0 %v179
    %240 = vmatprep.subr.mxu0 0.0
    %241 = vmatpush1.msra.mxu0 %v178
    %242 = vmatprep.subr.mxu0 0.0
    %243 = vmatpush1.msra.mxu0 %v177
    %244 = vmatprep.subr.mxu0 0.0
    %245 = vmatpush1.msra.mxu0 %v176
    %246 = vmatprep.subr.mxu0 0.0
    %247 = vmatpush1.msra.mxu0 %v175
    %248 = vmatprep.subr.mxu0 0.0
    %249 = vmatpush2.msra.mxu0 %v206
    %250 = vmatprep.subr.mxu0 0.0
    %251 = vmatpush2.msra.mxu0 %v205
    %252 = vmatprep.subr.mxu0 0.0
    %253 = vmatpush2.msra.mxu0 %v204
    %254 = vmatprep.subr.mxu0 0.0
    %255 = vmatpush2.msra.mxu0 %v203
    %256 = vmatprep.subr.mxu0 0.0
    %257 = vmatpush2.msra.mxu0 %v202
    %258 = vmatprep.subr.mxu0 0.0
    %259 = vmatpush2.msra.mxu0 %v201
    %260 = vmatprep.subr.mxu0 0.0
    %261 = vmatpush2.msra.mxu0 %v200
    %262 = vmatprep.subr.mxu0 0.0
    %263 = vmatpush2.msra.mxu0 %v199
    %264 = vmatprep.subr.mxu0 0.0
    %265 = vmatpush2.msra.mxu0 %v198
    %266 = vmatprep.subr.mxu0 0.0
    %267 = vmatpush2.msra.mxu0 %v197
    %268 = vmatprep.subr.mxu0 0.0
    %269 = vmatpush2.msra.mxu0 %v196
    %270 = vmatprep.subr.mxu0 0.0
    %271 = vmatpush2.msra.mxu0 %v195
    %272 = vmatprep.subr.mxu0 0.0
    %273 = vmatpush2.msra.mxu0 %v194
    %274 = vmatprep.subr.mxu0 0.0
    %275 = vmatpush2.msra.mxu0 %v193
    %276 = vmatprep.subr.mxu0 0.0
    %277 = vmatpush2.msra.mxu0 %v192
    %278 = vmatprep.subr.mxu0 0.0
    %279 = vmatpush2.msra.mxu0 %v191
    %280 = vmatprep.mubr.f32.mxu0 %v173
    %281 = vmatmul.mubr.f32.gmra.mxu0 %v172
    %v282 = vpop.f32.mrf.mxu0
    %v283 = vadd.f32 0.0, %v282
    %v284 = vpop.f32.mrf.mxu0
    %285 = vdwg.mxu0
    %286 = vmatprep.subr.mxu0 0.0
    %287 = vmatpush1.msra.mxu0 0.0
    %288 = vmatprep.subr.mxu0 0.0
    %289 = vmatpush1.msra.mxu0 0.0
    %290 = vmatprep.subr.mxu0 0.0
    %291 = vmatpush1.msra.mxu0 0.0
    %292 = vmatprep.subr.mxu0 0.0
    %293 = vmatpush1.msra.mxu0 0.0
    %294 = vmatprep.subr.mxu0 0.0
    %295 = vmatpush1.msra.mxu0 0.0
    %296 = vmatprep.subr.mxu0 0.0
    %297 = vmatpush1.msra.mxu0 0.0
    %298 = vmatprep.subr.mxu0 0.0
    %299 = vmatpush1.msra.mxu0 0.0
    %300 = vmatprep.subr.mxu0 0.0
    %301 = vmatpush1.msra.mxu0 0.0
    %302 = vmatprep.subr.mxu0 0.0
    %303 = vmatpush1.msra.mxu0 0.0
    %304 = vmatprep.subr.mxu0 0.0
    %305 = vmatpush1.msra.mxu0 0.0
    %306 = vmatprep.subr.mxu0 0.0
    %307 = vmatpush1.msra.mxu0 0.0
    %308 = vmatprep.subr.mxu0 0.0
    %309 = vmatpush1.msra.mxu0 0.0
    %310 = vmatprep.subr.mxu0 0.0
    %311 = vmatpush1.msra.mxu0 0.0
    %312 = vmatprep.subr.mxu0 0.0
    %313 = vmatpush1.msra.mxu0 0.0
    %314 = vmatprep.subr.mxu0 0.0
    %315 = vmatpush1.msra.mxu0 0.0
    %316 = vmatprep.subr.mxu0 0.0
    %317 = vmatpush1.msra.mxu0 %v214
    %318 = vmatprep.subr.mxu0 0.0
    %319 = vmatpush2.msra.mxu0 0.0
    %320 = vmatprep.subr.mxu0 0.0
    %321 = vmatpush2.msra.mxu0 0.0
    %322 = vmatprep.subr.mxu0 0.0
    %323 = vmatpush2.msra.mxu0 0.0
    %324 = vmatprep.subr.mxu0 0.0
    %325 = vmatpush2.msra.mxu0 0.0
    %326 = vmatprep.subr.mxu0 0.0
    %327 = vmatpush2.msra.mxu0 0.0
    %328 = vmatprep.subr.mxu0 0.0
    %329 = vmatpush2.msra.mxu0 0.0
    %330 = vmatprep.subr.mxu0 0.0
    %331 = vmatpush2.msra.mxu0 0.0
    %332 = vmatprep.subr.mxu0 0.0
    %333 = vmatpush2.msra.mxu0 0.0
    %334 = vmatprep.subr.mxu0 0.0
    %335 = vmatpush2.msra.mxu0 0.0
    %336 = vmatprep.subr.mxu0 0.0
    %337 = vmatpush2.msra.mxu0 0.0
    %338 = vmatprep.subr.mxu0 0.0
    %339 = vmatpush2.msra.mxu0 0.0
    %340 = vmatprep.subr.mxu0 0.0
    %341 = vmatpush2.msra.mxu0 0.0
    %342 = vmatprep.subr.mxu0 0.0
    %343 = vmatpush2.msra.mxu0 0.0
    %344 = vmatprep.subr.mxu0 0.0
    %345 = vmatpush2.msra.mxu0 0.0
    %346 = vmatprep.subr.mxu0 0.0
    %347 = vmatpush2.msra.mxu0 0.0
    %348 = vmatprep.subr.mxu0 0.0
    %349 = vmatpush2.msra.mxu0 0.0
    %350 = vmatprep.mubr.f32.mxu0 0.0
    %351 = vmatmul.mubr.f32.gmra.mxu0 %v210
    %v352 = vpop.f32.mrf.mxu0
    %v353 = vadd.f32 %v283, %v352
    %v354 = vpop.f32.mrf.mxu0
    %355 = vdwg.mxu0
    %v357 = vsel %vm208, %v138, 0
    %v360 = vsel %vm212, %v171, 0
    %362 = vmatprep.subr.mxu0 0.0
    %363 = vmatpush1.msra.mxu0 %v154
    %364 = vmatprep.subr.mxu0 0.0
    %365 = vmatpush1.msra.mxu0 %v153
    %366 = vmatprep.subr.mxu0 0.0
    %367 = vmatpush1.msra.mxu0 %v152
    %368 = vmatprep.subr.mxu0 0.0
    %369 = vmatpush1.msra.mxu0 %v151
    %370 = vmatprep.subr.mxu0 0.0
    %371 = vmatpush1.msra.mxu0 %v150
    %372 = vmatprep.subr.mxu0 0.0
    %373 = vmatpush1.msra.mxu0 %v149
    %374 = vmatprep.subr.mxu0 0.0
    %375 = vmatpush1.msra.mxu0 %v148
    %376 = vmatprep.subr.mxu0 0.0
    %377 = vmatpush1.msra.mxu0 %v147
    %378 = vmatprep.subr.mxu0 0.0
    %379 = vmatpush1.msra.mxu0 %v146
    %380 = vmatprep.subr.mxu0 0.0
    %381 = vmatpush1.msra.mxu0 %v145
    %382 = vmatprep.subr.mxu0 0.0
    %383 = vmatpush1.msra.mxu0 %v144
    %384 = vmatprep.subr.mxu0 0.0
    %385 = vmatpush1.msra.mxu0 %v143
    %386 = vmatprep.subr.mxu0 0.0
    %387 = vmatpush1.msra.mxu0 %v142
    %388 = vmatprep.subr.mxu0 0.0
    %389 = vmatpush1.msra.mxu0 %v141
    %390 = vmatprep.subr.mxu0 0.0
    %391 = vmatpush1.msra.mxu0 %v140
    %392 = vmatprep.subr.mxu0 0.0
    %393 = vmatpush1.msra.mxu0 %v139
    %394 = vmatprep.subr.mxu0 0.0
    %395 = vmatpush2.msra.mxu0 %v170
    %396 = vmatprep.subr.mxu0 0.0
    %397 = vmatpush2.msra.mxu0 %v169
    %398 = vmatprep.subr.mxu0 0.0
    %399 = vmatpush2.msra.mxu0 %v168
    %400 = vmatprep.subr.mxu0 0.0
    %401 = vmatpush2.msra.mxu0 %v167
    %402 = vmatprep.subr.mxu0 0.0
    %403 = vmatpush2.msra.mxu0 %v166
    %404 = vmatprep.subr.mxu0 0.0
    %405 = vmatpush2.msra.mxu0 %v165
    %406 = vmatprep.subr.mxu0 0.0
    %407 = vmatpush2.msra.mxu0 %v164
    %408 = vmatprep.subr.mxu0 0.0
    %409 = vmatpush2.msra.mxu0 %v163
    %410 = vmatprep.subr.mxu0 0.0
    %411 = vmatpush2.msra.mxu0 %v162
    %412 = vmatprep.subr.mxu0 0.0
    %413 = vmatpush2.msra.mxu0 %v161
    %414 = vmatprep.subr.mxu0 0.0
    %415 = vmatpush2.msra.mxu0 %v160
    %416 = vmatprep.subr.mxu0 0.0
    %417 = vmatpush2.msra.mxu0 %v159
    %418 = vmatprep.subr.mxu0 0.0
    %419 = vmatpush2.msra.mxu0 %v158
    %420 = vmatprep.subr.mxu0 0.0
    %421 = vmatpush2.msra.mxu0 %v157
    %422 = vmatprep.subr.mxu0 0.0
    %423 = vmatpush2.msra.mxu0 %v156
    %424 = vmatprep.subr.mxu0 0.0
    %425 = vmatpush2.msra.mxu0 %v155
    %426 = vmatprep.mubr.f32.mxu0 %v137
    %427 = vmatmul.mubr.f32.gmra.mxu0 %v136
    %v428 = vpop.f32.mrf.mxu0
    %v429 = vadd.f32 %v353, %v428
    %v430 = vpop.f32.mrf.mxu0
    %431 = vdwg.mxu0
    %432 = vmatprep.subr.mxu0 0.0
    %433 = vmatpush1.msra.mxu0 0.0
    %434 = vmatprep.subr.mxu0 0.0
    %435 = vmatpush1.msra.mxu0 0.0
    %436 = vmatprep.subr.mxu0 0.0
    %437 = vmatpush1.msra.mxu0 0.0
    %438 = vmatprep.subr.mxu0 0.0
    %439 = vmatpush1.msra.mxu0 0.0
    %440 = vmatprep.subr.mxu0 0.0
    %441 = vmatpush1.msra.mxu0 0.0
    %442 = vmatprep.subr.mxu0 0.0
    %443 = vmatpush1.msra.mxu0 0.0
    %444 = vmatprep.subr.mxu0 0.0
    %445 = vmatpush1.msra.mxu0 0.0
    %446 = vmatprep.subr.mxu0 0.0
    %447 = vmatpush1.msra.mxu0 0.0
    %448 = vmatprep.subr.mxu0 0.0
    %449 = vmatpush1.msra.mxu0 0.0
    %450 = vmatprep.subr.mxu0 0.0
    %451 = vmatpush1.msra.mxu0 0.0
    %452 = vmatprep.subr.mxu0 0.0
    %453 = vmatpush1.msra.mxu0 0.0
    %454 = vmatprep.subr.mxu0 0.0
    %455 = vmatpush1.msra.mxu0 0.0
    %456 = vmatprep.subr.mxu0 0.0
    %457 = vmatpush1.msra.mxu0 0.0
    %458 = vmatprep.subr.mxu0 0.0
    %459 = vmatpush1.msra.mxu0 0.0
    %460 = vmatprep.subr.mxu0 0.0
    %461 = vmatpush1.msra.mxu0 0.0
    %462 = vmatprep.subr.mxu0 0.0
    %463 = vmatpush1.msra.mxu0 %v360
    %464 = vmatprep.subr.mxu0 0.0
    %465 = vmatpush2.msra.mxu0 0.0
    %466 = vmatprep.subr.mxu0 0.0
    %467 = vmatpush2.msra.mxu0 0.0
    %468 = vmatprep.subr.mxu0 0.0
    %469 = vmatpush2.msra.mxu0 0.0
    %470 = vmatprep.subr.mxu0 0.0
    %471 = vmatpush2.msra.mxu0 0.0
    %472 = vmatprep.subr.mxu0 0.0
    %473 = vmatpush2.msra.mxu0 0.0
    %474 = vmatprep.subr.mxu0 0.0
    %475 = vmatpush2.msra.mxu0 0.0
    %476 = vmatprep.subr.mxu0 0.0
    %477 = vmatpush2.msra.mxu0 0.0
    %478 = vmatprep.subr.mxu0 0.0
    %479 = vmatpush2.msra.mxu0 0.0
    %480 = vmatprep.subr.mxu0 0.0
    %481 = vmatpush2.msra.mxu0 0.0
    %482 = vmatprep.subr.mxu0 0.0
    %483 = vmatpush2.msra.mxu0 0.0
    %484 = vmatprep.subr.mxu0 0.0
    %485 = vmatpush2.msra.mxu0 0.0
    %486 = vmatprep.subr.mxu0 0.0
    %487 = vmatpush2.msra.mxu0 0.0
    %488 = vmatprep.subr.mxu0 0.0
    %489 = vmatpush2.msra.mxu0 0.0
    %490 = vmatprep.subr.mxu0 0.0
    %491 = vmatpush2.msra.mxu0 0.0
    %492 = vmatprep.subr.mxu0 0.0
    %493 = vmatpush2.msra.mxu0 0.0
    %494 = vmatprep.subr.mxu0 0.0
    %495 = vmatpush2.msra.mxu0 0.0
    %496 = vmatprep.mubr.f32.mxu0 0.0
    %497 = vmatmul.mubr.f32.gmra.mxu0 %v357
    %v498 = vpop.f32.mrf.mxu0
    %v499 = vadd.f32 %v429, %v498
    %v500 = vpop.f32.mrf.mxu0
    %501 = vdwg.mxu0
    %v502 = vld [vmem:[%s7] sm:$0x1]
    %v503 = vlaneseq
    %v504 = vshrl.u32 %v503, 7
    %v505 = vsub.s32 0, %v504
    %v506 = vrot.slane %v502, %v505
    %v507 = vadd.f32 %v499, %v506
    %vm508 = vcmp.gt.f32.partialorder %v507, 0.0
    %v509 = vmul.f32 %v507, 0.01
    %v510 = vsel %vm508, %v507, %v509
    %v511 = vld [vmem:[#allocation9] sm:$0xff]
    %v512 = vld [vmem:[#allocation9 + $0x8] sm:$0xff]
    %v513 = vld [vmem:[#allocation9 + $0x10] sm:$0xff]
    %v514 = vld [vmem:[#allocation9 + $0x18] sm:$0xff]
    %v515 = vld [vmem:[#allocation9 + $0x20] sm:$0xff]
    %v516 = vld [vmem:[#allocation9 + $0x28] sm:$0xff]
    %v517 = vld [vmem:[#allocation9 + $0x30] sm:$0xff]
    %v518 = vld [vmem:[#allocation9 + $0x38] sm:$0xff]
    %v519 = vld [vmem:[#allocation9 + $0x40] sm:$0xff]
    %v520 = vld [vmem:[#allocation9 + $0x48] sm:$0xff]
    %v521 = vld [vmem:[#allocation9 + $0x50] sm:$0xff]
    %v522 = vld [vmem:[#allocation9 + $0x58] sm:$0xff]
    %v523 = vld [vmem:[#allocation9 + $0x60] sm:$0xff]
    %v524 = vld [vmem:[#allocation9 + $0x68] sm:$0xff]
    %v525 = vld [vmem:[#allocation9 + $0x70] sm:$0xff]
    %v526 = vld [vmem:[#allocation9 + $0x78] sm:$0xff]
    %v527 = vld [vmem:[%s7 + $0x1] sm:$0x1]
    %v528 = vlaneseq
    %v529 = vshrl.u32 %v528, 7
    %v530 = vsub.s32 0, %v529
    %v531 = vrot.slane %v527, %v530
    %532 = vmatprep.subr.mxu0 0.0
    %533 = vmatpush1.msra.mxu0 %v526
    %534 = vmatprep.subr.mxu0 0.0
    %535 = vmatpush1.msra.mxu0 %v525
    %536 = vmatprep.subr.mxu0 0.0
    %537 = vmatpush1.msra.mxu0 %v524
    %538 = vmatprep.subr.mxu0 0.0
    %539 = vmatpush1.msra.mxu0 %v523
    %540 = vmatprep.subr.mxu0 0.0
    %541 = vmatpush1.msra.mxu0 %v522
    %542 = vmatprep.subr.mxu0 0.0
    %543 = vmatpush1.msra.mxu0 %v521
    %544 = vmatprep.subr.mxu0 0.0
    %545 = vmatpush1.msra.mxu0 %v520
    %546 = vmatprep.subr.mxu0 0.0
    %547 = vmatpush1.msra.mxu0 %v519
    %548 = vmatprep.subr.mxu0 0.0
    %549 = vmatpush1.msra.mxu0 %v518
    %550 = vmatprep.subr.mxu0 0.0
    %551 = vmatpush1.msra.mxu0 %v517
    %552 = vmatprep.subr.mxu0 0.0
    %553 = vmatpush1.msra.mxu0 %v516
    %554 = vmatprep.subr.mxu0 0.0
    %555 = vmatpush1.msra.mxu0 %v515
    %556 = vmatprep.subr.mxu0 0.0
    %557 = vmatpush1.msra.mxu0 %v514
    %558 = vmatprep.subr.mxu0 0.0
    %559 = vmatpush1.msra.mxu0 %v513
    %560 = vmatprep.subr.mxu0 0.0
    %561 = vmatpush1.msra.mxu0 %v512
    %562 = vmatprep.subr.mxu0 0.0
    %563 = vmatpush1.msra.mxu0 %v511
    %564 = vmatprep.subr.mxu0 0.0
    %565 = vmatpush2.msra.mxu0 0.0
    %566 = vmatprep.subr.mxu0 0.0
    %567 = vmatpush2.msra.mxu0 0.0
    %568 = vmatprep.subr.mxu0 0.0
    %569 = vmatpush2.msra.mxu0 0.0
    %570 = vmatprep.subr.mxu0 0.0
    %571 = vmatpush2.msra.mxu0 0.0
    %572 = vmatprep.subr.mxu0 0.0
    %573 = vmatpush2.msra.mxu0 0.0
    %574 = vmatprep.subr.mxu0 0.0
    %575 = vmatpush2.msra.mxu0 0.0
    %576 = vmatprep.subr.mxu0 0.0
    %577 = vmatpush2.msra.mxu0 0.0
    %578 = vmatprep.subr.mxu0 0.0
    %579 = vmatpush2.msra.mxu0 0.0
    %580 = vmatprep.subr.mxu0 0.0
    %581 = vmatpush2.msra.mxu0 0.0
    %582 = vmatprep.subr.mxu0 0.0
    %583 = vmatpush2.msra.mxu0 0.0
    %584 = vmatprep.subr.mxu0 0.0
    %585 = vmatpush2.msra.mxu0 0.0
    %586 = vmatprep.subr.mxu0 0.0
    %587 = vmatpush2.msra.mxu0 0.0
    %588 = vmatprep.subr.mxu0 0.0
    %589 = vmatpush2.msra.mxu0 0.0
    %590 = vmatprep.subr.mxu0 0.0
    %591 = vmatpush2.msra.mxu0 0.0
    %592 = vmatprep.subr.mxu0 0.0
    %593 = vmatpush2.msra.mxu0 0.0
    %594 = vmatprep.subr.mxu0 0.0
    %595 = vmatpush2.msra.mxu0 0.0
    %596 = vmatprep.mubr.f32.mxu0 0.0
    %597 = vmatmul.mubr.f32.gmra.mxu0 %v510
    %v598 = vpop.f32.mrf.mxu0
    %v599 = vadd.f32 %v531, %v598
    %v600 = vpop.f32.mrf.mxu0
    %601 = vdwg.mxu0
    %vm602 = vcmp.gt.f32.partialorder %v599, 0.0
    %v603 = vmul.f32 %v599, 0.01
    %v604 = vsel %vm602, %v599, %v603
    %s605 = scalar_lea.vmem [#allocation9], 128
    %v606 = vld [vmem:[%s605] sm:$0xff]
    %v607 = vld [vmem:[%s605 + $0x8] sm:$0xff]
    %v608 = vld [vmem:[%s605 + $0x10] sm:$0xff]
    %v609 = vld [vmem:[%s605 + $0x18] sm:$0xff]
    %v610 = vld [vmem:[%s605 + $0x20] sm:$0xff]
    %v611 = vld [vmem:[%s605 + $0x28] sm:$0xff]
    %v612 = vld [vmem:[%s605 + $0x30] sm:$0xff]
    %v613 = vld [vmem:[%s605 + $0x38] sm:$0xff]
    %v614 = vld [vmem:[%s605 + $0x40] sm:$0xff]
    %v615 = vld [vmem:[%s605 + $0x48] sm:$0xff]
    %v616 = vld [vmem:[%s605 + $0x50] sm:$0xff]
    %v617 = vld [vmem:[%s605 + $0x58] sm:$0xff]
    %v618 = vld [vmem:[%s605 + $0x60] sm:$0xff]
    %v619 = vld [vmem:[%s605 + $0x68] sm:$0xff]
    %v620 = vld [vmem:[%s605 + $0x70] sm:$0xff]
    %v621 = vld [vmem:[%s605 + $0x78] sm:$0xff]
    %v622 = vld [vmem:[%s7 + $0x2] sm:$0x1]
    %v623 = vlaneseq
    %v624 = vshrl.u32 %v623, 7
    %v625 = vsub.s32 0, %v624
    %v626 = vrot.slane %v622, %v625
    %627 = vmatprep.subr.mxu0 0.0
    %628 = vmatpush1.msra.mxu0 %v621
    %629 = vmatprep.subr.mxu0 0.0
    %630 = vmatpush1.msra.mxu0 %v620
    %631 = vmatprep.subr.mxu0 0.0
    %632 = vmatpush1.msra.mxu0 %v619
    %633 = vmatprep.subr.mxu0 0.0
    %634 = vmatpush1.msra.mxu0 %v618
    %635 = vmatprep.subr.mxu0 0.0
    %636 = vmatpush1.msra.mxu0 %v617
    %637 = vmatprep.subr.mxu0 0.0
    %638 = vmatpush1.msra.mxu0 %v616
    %639 = vmatprep.subr.mxu0 0.0
    %640 = vmatpush1.msra.mxu0 %v615
    %641 = vmatprep.subr.mxu0 0.0
    %642 = vmatpush1.msra.mxu0 %v614
    %643 = vmatprep.subr.mxu0 0.0
    %644 = vmatpush1.msra.mxu0 %v613
    %645 = vmatprep.subr.mxu0 0.0
    %646 = vmatpush1.msra.mxu0 %v612
    %647 = vmatprep.subr.mxu0 0.0
    %648 = vmatpush1.msra.mxu0 %v611
    %649 = vmatprep.subr.mxu0 0.0
    %650 = vmatpush1.msra.mxu0 %v610
    %651 = vmatprep.subr.mxu0 0.0
    %652 = vmatpush1.msra.mxu0 %v609
    %653 = vmatprep.subr.mxu0 0.0
    %654 = vmatpush1.msra.mxu0 %v608
    %655 = vmatprep.subr.mxu0 0.0
    %656 = vmatpush1.msra.mxu0 %v607
    %657 = vmatprep.subr.mxu0 0.0
    %658 = vmatpush1.msra.mxu0 %v606
    %659 = vmatprep.subr.mxu0 0.0
    %660 = vmatpush2.msra.mxu0 0.0
    %661 = vmatprep.subr.mxu0 0.0
    %662 = vmatpush2.msra.mxu0 0.0
    %663 = vmatprep.subr.mxu0 0.0
    %664 = vmatpush2.msra.mxu0 0.0
    %665 = vmatprep.subr.mxu0 0.0
    %666 = vmatpush2.msra.mxu0 0.0
    %667 = vmatprep.subr.mxu0 0.0
    %668 = vmatpush2.msra.mxu0 0.0
    %669 = vmatprep.subr.mxu0 0.0
    %670 = vmatpush2.msra.mxu0 0.0
    %671 = vmatprep.subr.mxu0 0.0
    %672 = vmatpush2.msra.mxu0 0.0
    %673 = vmatprep.subr.mxu0 0.0
    %674 = vmatpush2.msra.mxu0 0.0
    %675 = vmatprep.subr.mxu0 0.0
    %676 = vmatpush2.msra.mxu0 0.0
    %677 = vmatprep.subr.mxu0 0.0
    %678 = vmatpush2.msra.mxu0 0.0
    %679 = vmatprep.subr.mxu0 0.0
    %680 = vmatpush2.msra.mxu0 0.0
    %681 = vmatprep.subr.mxu0 0.0
    %682 = vmatpush2.msra.mxu0 0.0
    %683 = vmatprep.subr.mxu0 0.0
    %684 = vmatpush2.msra.mxu0 0.0
    %685 = vmatprep.subr.mxu0 0.0
    %686 = vmatpush2.msra.mxu0 0.0
    %687 = vmatprep.subr.mxu0 0.0
    %688 = vmatpush2.msra.mxu0 0.0
    %689 = vmatprep.subr.mxu0 0.0
    %690 = vmatpush2.msra.mxu0 0.0
    %691 = vmatprep.mubr.f32.mxu0 0.0
    %692 = vmatmul.mubr.f32.gmra.mxu0 %v604
    %v693 = vpop.f32.mrf.mxu0
    %v694 = vadd.f32 %v626, %v693
    %v695 = vpop.f32.mrf.mxu0
    %696 = vdwg.mxu0
    %v697 = vld [vmem:[#allocation4] sm:$0x3]
    %vm698 = vcmask 64512
    %v700 = vsel %vm698, %v697, 0
    %702 = vmatprep.subr.mxu0 0.0
    %703 = vmatpush1.msra.mxu0 0.0
    %704 = vmatprep.subr.mxu0 0.0
    %705 = vmatpush1.msra.mxu0 0.0
    %706 = vmatprep.subr.mxu0 0.0
    %707 = vmatpush1.msra.mxu0 0.0
    %708 = vmatprep.subr.mxu0 0.0
    %709 = vmatpush1.msra.mxu0 0.0
    %710 = vmatprep.subr.mxu0 0.0
    %711 = vmatpush1.msra.mxu0 0.0
    %712 = vmatprep.subr.mxu0 0.0
    %713 = vmatpush1.msra.mxu0 0.0
    %714 = vmatprep.subr.mxu0 0.0
    %715 = vmatpush1.msra.mxu0 0.0
    %716 = vmatprep.subr.mxu0 0.0
    %717 = vmatpush1.msra.mxu0 0.0
    %718 = vmatprep.subr.mxu0 0.0
    %719 = vmatpush1.msra.mxu0 0.0
    %720 = vmatprep.subr.mxu0 0.0
    %721 = vmatpush1.msra.mxu0 0.0
    %722 = vmatprep.subr.mxu0 0.0
    %723 = vmatpush1.msra.mxu0 0.0
    %724 = vmatprep.subr.mxu0 0.0
    %725 = vmatpush1.msra.mxu0 0.0
    %726 = vmatprep.subr.mxu0 0.0
    %727 = vmatpush1.msra.mxu0 0.0
    %728 = vmatprep.subr.mxu0 0.0
    %729 = vmatpush1.msra.mxu0 0.0
    %730 = vmatprep.subr.mxu0 0.0
    %731 = vmatpush1.msra.mxu0 0.0
    %732 = vmatprep.subr.mxu0 0.0
    %733 = vmatpush1.msra.mxu0 %v694
    %734 = vmatprep.subr.mxu0 0.0
    %735 = vmatpush2.msra.mxu0 0.0
    %736 = vmatprep.subr.mxu0 0.0
    %737 = vmatpush2.msra.mxu0 0.0
    %738 = vmatprep.subr.mxu0 0.0
    %739 = vmatpush2.msra.mxu0 0.0
    %740 = vmatprep.subr.mxu0 0.0
    %741 = vmatpush2.msra.mxu0 0.0
    %742 = vmatprep.subr.mxu0 0.0
    %743 = vmatpush2.msra.mxu0 0.0
    %744 = vmatprep.subr.mxu0 0.0
    %745 = vmatpush2.msra.mxu0 0.0
    %746 = vmatprep.subr.mxu0 0.0
    %747 = vmatpush2.msra.mxu0 0.0
    %748 = vmatprep.subr.mxu0 0.0
    %749 = vmatpush2.msra.mxu0 0.0
    %750 = vmatprep.subr.mxu0 0.0
    %751 = vmatpush2.msra.mxu0 0.0
    %752 = vmatprep.subr.mxu0 0.0
    %753 = vmatpush2.msra.mxu0 0.0
    %754 = vmatprep.subr.mxu0 0.0
    %755 = vmatpush2.msra.mxu0 0.0
    %756 = vmatprep.subr.mxu0 0.0
    %757 = vmatpush2.msra.mxu0 0.0
    %758 = vmatprep.subr.mxu0 0.0
    %759 = vmatpush2.msra.mxu0 0.0
    %760 = vmatprep.subr.mxu0 0.0
    %761 = vmatpush2.msra.mxu0 0.0
    %762 = vmatprep.subr.mxu0 0.0
    %763 = vmatpush2.msra.mxu0 0.0
    %764 = vmatprep.subr.mxu0 0.0
    %765 = vmatpush2.msra.mxu0 0.0
    %766 = vmatprep.mubr.f32.mxu0 0.0
    %767 = vmatmul.mubr.f32.gmra.mxu0 %v700
    %v768 = vpop.f32.mrf.mxu0
    %v769 = vadd.f32 0.0, %v768
    %v770 = vpop.f32.mrf.mxu0
    %771 = vdwg.mxu0
    %v772 = vld [vmem:[#allocation2] sm:$0x3]
    %v773 = vld [vmem:[%s8] sm:$0xff]
    %v774 = vld [vmem:[%s8 + $0x8] sm:$0xff]
    %v775 = vld [vmem:[%s8 + $0x10] sm:$0xff]
    %v776 = vld [vmem:[%s8 + $0x18] sm:$0xff]
    %v777 = vld [vmem:[%s8 + $0x20] sm:$0xff]
    %v778 = vld [vmem:[%s8 + $0x28] sm:$0xff]
    %v779 = vld [vmem:[%s8 + $0x30] sm:$0xff]
    %v780 = vld [vmem:[%s8 + $0x38] sm:$0xff]
    %v781 = vld [vmem:[%s9] sm:$0xff]
    %v782 = vld [vmem:[%s9 + $0x8] sm:$0xff]
    %v783 = vld [vmem:[%s9 + $0x10] sm:$0xff]
    %v784 = vld [vmem:[%s9 + $0x18] sm:$0xff]
    %v785 = vld [vmem:[%s9 + $0x20] sm:$0xff]
    %v786 = vld [vmem:[%s9 + $0x28] sm:$0xff]
    %v787 = vld [vmem:[%s9 + $0x30] sm:$0xff]
    %v788 = vld [vmem:[%s9 + $0x38] sm:$0xff]
    %v789 = vld [vmem:[%s9 + $0x40] sm:$0xff]
    %v790 = vld [vmem:[%s9 + $0x48] sm:$0xff]
    %v791 = vld [vmem:[%s9 + $0x50] sm:$0xff]
    %v792 = vld [vmem:[%s9 + $0x58] sm:$0xff]
    %v793 = vld [vmem:[%s9 + $0x60] sm:$0xff]
    %v794 = vld [vmem:[%s9 + $0x68] sm:$0xff]
    %v795 = vld [vmem:[%s9 + $0x70] sm:$0xff]
    %v796 = vld [vmem:[%s9 + $0x78] sm:$0xff]
    %v797 = vld [vmem:[%s9 + $0x80] sm:$0xff]
    %v798 = vld [vmem:[%s9 + $0x88] sm:$0xff]
    %v799 = vld [vmem:[%s9 + $0x90] sm:$0xff]
    %v800 = vld [vmem:[%s9 + $0x98] sm:$0xff]
    %v801 = vld [vmem:[%s9 + $0xa0] sm:$0xff]
    %v802 = vld [vmem:[%s9 + $0xa8] sm:$0xff]
    %v803 = vld [vmem:[%s9 + $0xb0] sm:$0xff]
    %v804 = vld [vmem:[%s9 + $0xb8] sm:$0xff]
    %v805 = vld [vmem:[%s9 + $0xc0] sm:$0xff]
    %v806 = vld [vmem:[%s9 + $0xc8] sm:$0xff]
    %v807 = vld [vmem:[%s9 + $0xd0] sm:$0xff]
    %v808 = vld [vmem:[%s9 + $0xd8] sm:$0xff]
    %v809 = vld [vmem:[%s9 + $0xe0] sm:$0xff]
    %v810 = vld [vmem:[%s9 + $0xe8] sm:$0xff]
    %v811 = vld [vmem:[%s9 + $0xf0] sm:$0xff]
    %v812 = vld [vmem:[%s9 + $0xf8] sm:$0xff]
    %v813 = vld [vmem:[%s9 + $0x100] sm:$0xff]
    %v814 = vld [vmem:[%s9 + $0x108] sm:$0xff]
    %v815 = vld [vmem:[%s9 + $0x110] sm:$0xff]
    %v816 = vld [vmem:[%s9 + $0x118] sm:$0xff]
    %v817 = vld [vmem:[%s9 + $0x120] sm:$0xff]
    %v818 = vld [vmem:[%s9 + $0x128] sm:$0xff]
    %v819 = vld [vmem:[%s9 + $0x130] sm:$0xff]
    %v820 = vld [vmem:[%s9 + $0x138] sm:$0xff]
    %v821 = vld [vmem:[%s9 + $0x140] sm:$0xff]
    %v822 = vld [vmem:[%s9 + $0x148] sm:$0xff]
    %v823 = vld [vmem:[%s9 + $0x150] sm:$0xff]
    %v824 = vld [vmem:[%s9 + $0x158] sm:$0xff]
    %v825 = vld [vmem:[%s9 + $0x160] sm:$0xff]
    %v826 = vld [vmem:[%s9 + $0x168] sm:$0xff]
    %v827 = vld [vmem:[%s9 + $0x170] sm:$0xff]
    %v828 = vld [vmem:[%s9 + $0x178] sm:$0xff]
    %v829 = vld [vmem:[%s9 + $0x180] sm:$0xff]
    %v830 = vld [vmem:[%s9 + $0x188] sm:$0xff]
    %v831 = vld [vmem:[%s9 + $0x190] sm:$0xff]
    %v832 = vld [vmem:[%s9 + $0x198] sm:$0xff]
    %v833 = vld [vmem:[%s9 + $0x1a0] sm:$0xff]
    %v834 = vld [vmem:[%s9 + $0x1a8] sm:$0xff]
    %v835 = vld [vmem:[%s9 + $0x1b0] sm:$0xff]
    %v836 = vld [vmem:[%s9 + $0x1b8] sm:$0xff]
    %v837 = vld [vmem:[%s9 + $0x1c0] sm:$0xff]
    %v838 = vld [vmem:[%s9 + $0x1c8] sm:$0xff]
    %v839 = vld [vmem:[%s9 + $0x1d0] sm:$0xff]
    %v840 = vld [vmem:[%s9 + $0x1d8] sm:$0xff]
    %v841 = vld [vmem:[%s9 + $0x1e0] sm:$0xff]
    %v842 = vld [vmem:[%s9 + $0x1e8] sm:$0xff]
    %v843 = vld [vmem:[%s9 + $0x1f0] sm:$0xff]
    %v844 = vld [vmem:[%s9 + $0x1f8] sm:$0xff]
    %845 = vmatprep.subr.mxu0 %v842
    %846 = vmatpush1.msra.mxu0 %v841
    %847 = vmatprep.subr.mxu0 %v838
    %848 = vmatpush1.msra.mxu0 %v837
    %849 = vmatprep.subr.mxu0 %v834
    %850 = vmatpush1.msra.mxu0 %v833
    %851 = vmatprep.subr.mxu0 %v830
    %852 = vmatpush1.msra.mxu0 %v829
    %853 = vmatprep.subr.mxu0 %v826
    %854 = vmatpush1.msra.mxu0 %v825
    %855 = vmatprep.subr.mxu0 %v822
    %856 = vmatpush1.msra.mxu0 %v821
    %857 = vmatprep.subr.mxu0 %v818
    %858 = vmatpush1.msra.mxu0 %v817
    %859 = vmatprep.subr.mxu0 %v814
    %860 = vmatpush1.msra.mxu0 %v813
    %861 = vmatprep.subr.mxu0 %v810
    %862 = vmatpush1.msra.mxu0 %v809
    %863 = vmatprep.subr.mxu0 %v806
    %864 = vmatpush1.msra.mxu0 %v805
    %865 = vmatprep.subr.mxu0 %v802
    %866 = vmatpush1.msra.mxu0 %v801
    %867 = vmatprep.subr.mxu0 %v798
    %868 = vmatpush1.msra.mxu0 %v797
    %869 = vmatprep.subr.mxu0 %v794
    %870 = vmatpush1.msra.mxu0 %v793
    %871 = vmatprep.subr.mxu0 %v790
    %872 = vmatpush1.msra.mxu0 %v789
    %873 = vmatprep.subr.mxu0 %v786
    %874 = vmatpush1.msra.mxu0 %v785
    %875 = vmatprep.subr.mxu0 %v782
    %876 = vmatpush1.msra.mxu0 %v781
    %877 = vmatprep.subr.mxu0 0.0
    %878 = vmatpush2.msra.mxu0 0.0
    %879 = vmatprep.subr.mxu0 0.0
    %880 = vmatpush2.msra.mxu0 0.0
    %881 = vmatprep.subr.mxu0 0.0
    %882 = vmatpush2.msra.mxu0 0.0
    %883 = vmatprep.subr.mxu0 0.0
    %884 = vmatpush2.msra.mxu0 0.0
    %885 = vmatprep.subr.mxu0 0.0
    %886 = vmatpush2.msra.mxu0 0.0
    %887 = vmatprep.subr.mxu0 0.0
    %888 = vmatpush2.msra.mxu0 0.0
    %889 = vmatprep.subr.mxu0 0.0
    %890 = vmatpush2.msra.mxu0 0.0
    %891 = vmatprep.subr.mxu0 0.0
    %892 = vmatpush2.msra.mxu0 0.0
    %893 = vmatprep.subr.mxu0 0.0
    %894 = vmatpush2.msra.mxu0 0.0
    %895 = vmatprep.subr.mxu0 0.0
    %896 = vmatpush2.msra.mxu0 0.0
    %897 = vmatprep.subr.mxu0 0.0
    %898 = vmatpush2.msra.mxu0 0.0
    %899 = vmatprep.subr.mxu0 0.0
    %900 = vmatpush2.msra.mxu0 0.0
    %901 = vmatprep.subr.mxu0 0.0
    %902 = vmatpush2.msra.mxu0 0.0
    %903 = vmatprep.subr.mxu0 0.0
    %904 = vmatpush2.msra.mxu0 0.0
    %905 = vmatprep.subr.mxu0 0.0
    %906 = vmatpush2.msra.mxu0 0.0
    %907 = vmatprep.subr.mxu0 0.0
    %908 = vmatpush2.msra.mxu0 0.0
    %909 = vmatprep.mubr.f32.mxu0 0.0
    %910 = vmatmul.mubr.f32.gmra.mxu0 %v769
    %v911 = vpop.f32.mrf.mxu0
    %v912 = vadd.f32 0.0, %v911
    %v913 = vpop.f32.mrf.mxu0
    %v914 = vadd.f32 0.0, %v913
    %915 = vdwg.mxu0
    %916 = vmatprep.subr.mxu0 %v844
    %917 = vmatpush1.msra.mxu0 %v843
    %918 = vmatprep.subr.mxu0 %v840
    %919 = vmatpush1.msra.mxu0 %v839
    %920 = vmatprep.subr.mxu0 %v836
    %921 = vmatpush1.msra.mxu0 %v835
    %922 = vmatprep.subr.mxu0 %v832
    %923 = vmatpush1.msra.mxu0 %v831
    %924 = vmatprep.subr.mxu0 %v828
    %925 = vmatpush1.msra.mxu0 %v827
    %926 = vmatprep.subr.mxu0 %v824
    %927 = vmatpush1.msra.mxu0 %v823
    %928 = vmatprep.subr.mxu0 %v820
    %929 = vmatpush1.msra.mxu0 %v819
    %930 = vmatprep.subr.mxu0 %v816
    %931 = vmatpush1.msra.mxu0 %v815
    %932 = vmatprep.subr.mxu0 %v812
    %933 = vmatpush1.msra.mxu0 %v811
    %934 = vmatprep.subr.mxu0 %v808
    %935 = vmatpush1.msra.mxu0 %v807
    %936 = vmatprep.subr.mxu0 %v804
    %937 = vmatpush1.msra.mxu0 %v803
    %938 = vmatprep.subr.mxu0 %v800
    %939 = vmatpush1.msra.mxu0 %v799
    %940 = vmatprep.subr.mxu0 %v796
    %941 = vmatpush1.msra.mxu0 %v795
    %942 = vmatprep.subr.mxu0 %v792
    %943 = vmatpush1.msra.mxu0 %v791
    %944 = vmatprep.subr.mxu0 %v788
    %945 = vmatpush1.msra.mxu0 %v787
    %946 = vmatprep.subr.mxu0 %v784
    %947 = vmatpush1.msra.mxu0 %v783
    %948 = vmatprep.subr.mxu0 0.0
    %949 = vmatpush2.msra.mxu0 0.0
    %950 = vmatprep.subr.mxu0 0.0
    %951 = vmatpush2.msra.mxu0 0.0
    %952 = vmatprep.subr.mxu0 0.0
    %953 = vmatpush2.msra.mxu0 0.0
    %954 = vmatprep.subr.mxu0 0.0
    %955 = vmatpush2.msra.mxu0 0.0
    %956 = vmatprep.subr.mxu0 0.0
    %957 = vmatpush2.msra.mxu0 0.0
    %958 = vmatprep.subr.mxu0 0.0
    %959 = vmatpush2.msra.mxu0 0.0
    %960 = vmatprep.subr.mxu0 0.0
    %961 = vmatpush2.msra.mxu0 0.0
    %962 = vmatprep.subr.mxu0 0.0
    %963 = vmatpush2.msra.mxu0 0.0
    %964 = vmatprep.subr.mxu0 0.0
    %965 = vmatpush2.msra.mxu0 0.0
    %966 = vmatprep.subr.mxu0 0.0
    %967 = vmatpush2.msra.mxu0 0.0
    %968 = vmatprep.subr.mxu0 0.0
    %969 = vmatpush2.msra.mxu0 0.0
    %970 = vmatprep.subr.mxu0 0.0
    %971 = vmatpush2.msra.mxu0 0.0
    %972 = vmatprep.subr.mxu0 0.0
    %973 = vmatpush2.msra.mxu0 0.0
    %974 = vmatprep.subr.mxu0 0.0
    %975 = vmatpush2.msra.mxu0 0.0
    %976 = vmatprep.subr.mxu0 0.0
    %977 = vmatpush2.msra.mxu0 0.0
    %978 = vmatprep.subr.mxu0 0.0
    %979 = vmatpush2.msra.mxu0 0.0
    %980 = vmatprep.mubr.f32.mxu0 0.0
    %981 = vmatmul.mubr.f32.gmra.mxu0 %v769
    %v982 = vpop.f32.mrf.mxu0
    %v983 = vadd.f32 0.0, %v982
    %v984 = vpop.f32.mrf.mxu0
    %v985 = vadd.f32 0.0, %v984
    %986 = vdwg.mxu0
    %vm987 = vcmask 130048
    %v989 = vsel %vm987, %v772, 0
    %991 = vmatprep.subr.mxu0 0.0
    %992 = vmatpush1.msra.mxu0 0.0
    %993 = vmatprep.subr.mxu0 0.0
    %994 = vmatpush1.msra.mxu0 0.0
    %995 = vmatprep.subr.mxu0 0.0
    %996 = vmatpush1.msra.mxu0 0.0
    %997 = vmatprep.subr.mxu0 0.0
    %998 = vmatpush1.msra.mxu0 0.0
    %999 = vmatprep.subr.mxu0 0.0
    %1000 = vmatpush1.msra.mxu0 0.0
    %1001 = vmatprep.subr.mxu0 0.0
    %1002 = vmatpush1.msra.mxu0 0.0
    %1003 = vmatprep.subr.mxu0 0.0
    %1004 = vmatpush1.msra.mxu0 0.0
    %1005 = vmatprep.subr.mxu0 0.0
    %1006 = vmatpush1.msra.mxu0 0.0
    %1007 = vmatprep.subr.mxu0 0.0
    %1008 = vmatpush1.msra.mxu0 0.0
    %1009 = vmatprep.subr.mxu0 0.0
    %1010 = vmatpush1.msra.mxu0 0.0
    %1011 = vmatprep.subr.mxu0 0.0
    %1012 = vmatpush1.msra.mxu0 0.0
    %1013 = vmatprep.subr.mxu0 0.0
    %1014 = vmatpush1.msra.mxu0 0.0
    %1015 = vmatprep.subr.mxu0 0.0
    %1016 = vmatpush1.msra.mxu0 0.0
    %1017 = vmatprep.subr.mxu0 0.0
    %1018 = vmatpush1.msra.mxu0 0.0
    %1019 = vmatprep.subr.mxu0 %v778
    %1020 = vmatpush1.msra.mxu0 %v777
    %1021 = vmatprep.subr.mxu0 %v774
    %1022 = vmatpush1.msra.mxu0 %v773
    %1023 = vmatprep.subr.mxu0 0.0
    %1024 = vmatpush2.msra.mxu0 0.0
    %1025 = vmatprep.subr.mxu0 0.0
    %1026 = vmatpush2.msra.mxu0 0.0
    %1027 = vmatprep.subr.mxu0 0.0
    %1028 = vmatpush2.msra.mxu0 0.0
    %1029 = vmatprep.subr.mxu0 0.0
    %1030 = vmatpush2.msra.mxu0 0.0
    %1031 = vmatprep.subr.mxu0 0.0
    %1032 = vmatpush2.msra.mxu0 0.0
    %1033 = vmatprep.subr.mxu0 0.0
    %1034 = vmatpush2.msra.mxu0 0.0
    %1035 = vmatprep.subr.mxu0 0.0
    %1036 = vmatpush2.msra.mxu0 0.0
    %1037 = vmatprep.subr.mxu0 0.0
    %1038 = vmatpush2.msra.mxu0 0.0
    %1039 = vmatprep.subr.mxu0 0.0
    %1040 = vmatpush2.msra.mxu0 0.0
    %1041 = vmatprep.subr.mxu0 0.0
    %1042 = vmatpush2.msra.mxu0 0.0
    %1043 = vmatprep.subr.mxu0 0.0
    %1044 = vmatpush2.msra.mxu0 0.0
    %1045 = vmatprep.subr.mxu0 0.0
    %1046 = vmatpush2.msra.mxu0 0.0
    %1047 = vmatprep.subr.mxu0 0.0
    %1048 = vmatpush2.msra.mxu0 0.0
    %1049 = vmatprep.subr.mxu0 0.0
    %1050 = vmatpush2.msra.mxu0 0.0
    %1051 = vmatprep.subr.mxu0 0.0
    %1052 = vmatpush2.msra.mxu0 0.0
    %1053 = vmatprep.subr.mxu0 0.0
    %1054 = vmatpush2.msra.mxu0 0.0
    %1055 = vmatprep.mubr.f32.mxu0 0.0
    %1056 = vmatmul.mubr.f32.gmra.mxu0 %v989
    %v1057 = vpop.f32.mrf.mxu0
    %v1058 = vadd.f32 %v912, %v1057
    %v1059 = vpop.f32.mrf.mxu0
    %v1060 = vadd.f32 %v914, %v1059
    %1061 = vdwg.mxu0
    %1062 = vmatprep.subr.mxu0 0.0
    %1063 = vmatpush1.msra.mxu0 0.0
    %1064 = vmatprep.subr.mxu0 0.0
    %1065 = vmatpush1.msra.mxu0 0.0
    %1066 = vmatprep.subr.mxu0 0.0
    %1067 = vmatpush1.msra.mxu0 0.0
    %1068 = vmatprep.subr.mxu0 0.0
    %1069 = vmatpush1.msra.mxu0 0.0
    %1070 = vmatprep.subr.mxu0 0.0
    %1071 = vmatpush1.msra.mxu0 0.0
    %1072 = vmatprep.subr.mxu0 0.0
    %1073 = vmatpush1.msra.mxu0 0.0
    %1074 = vmatprep.subr.mxu0 0.0
    %1075 = vmatpush1.msra.mxu0 0.0
    %1076 = vmatprep.subr.mxu0 0.0
    %1077 = vmatpush1.msra.mxu0 0.0
    %1078 = vmatprep.subr.mxu0 0.0
    %1079 = vmatpush1.msra.mxu0 0.0
    %1080 = vmatprep.subr.mxu0 0.0
    %1081 = vmatpush1.msra.mxu0 0.0
    %1082 = vmatprep.subr.mxu0 0.0
    %1083 = vmatpush1.msra.mxu0 0.0
    %1084 = vmatprep.subr.mxu0 0.0
    %1085 = vmatpush1.msra.mxu0 0.0
    %1086 = vmatprep.subr.mxu0 0.0
    %1087 = vmatpush1.msra.mxu0 0.0
    %1088 = vmatprep.subr.mxu0 0.0
    %1089 = vmatpush1.msra.mxu0 0.0
    %1090 = vmatprep.subr.mxu0 %v780
    %1091 = vmatpush1.msra.mxu0 %v779
    %1092 = vmatprep.subr.mxu0 %v776
    %1093 = vmatpush1.msra.mxu0 %v775
    %1094 = vmatprep.subr.mxu0 0.0
    %1095 = vmatpush2.msra.mxu0 0.0
    %1096 = vmatprep.subr.mxu0 0.0
    %1097 = vmatpush2.msra.mxu0 0.0
    %1098 = vmatprep.subr.mxu0 0.0
    %1099 = vmatpush2.msra.mxu0 0.0
    %1100 = vmatprep.subr.mxu0 0.0
    %1101 = vmatpush2.msra.mxu0 0.0
    %1102 = vmatprep.subr.mxu0 0.0
    %1103 = vmatpush2.msra.mxu0 0.0
    %1104 = vmatprep.subr.mxu0 0.0
    %1105 = vmatpush2.msra.mxu0 0.0
    %1106 = vmatprep.subr.mxu0 0.0
    %1107 = vmatpush2.msra.mxu0 0.0
    %1108 = vmatprep.subr.mxu0 0.0
    %1109 = vmatpush2.msra.mxu0 0.0
    %1110 = vmatprep.subr.mxu0 0.0
    %1111 = vmatpush2.msra.mxu0 0.0
    %1112 = vmatprep.subr.mxu0 0.0
    %1113 = vmatpush2.msra.mxu0 0.0
    %1114 = vmatprep.subr.mxu0 0.0
    %1115 = vmatpush2.msra.mxu0 0.0
    %1116 = vmatprep.subr.mxu0 0.0
    %1117 = vmatpush2.msra.mxu0 0.0
    %1118 = vmatprep.subr.mxu0 0.0
    %1119 = vmatpush2.msra.mxu0 0.0
    %1120 = vmatprep.subr.mxu0 0.0
    %1121 = vmatpush2.msra.mxu0 0.0
    %1122 = vmatprep.subr.mxu0 0.0
    %1123 = vmatpush2.msra.mxu0 0.0
    %1124 = vmatprep.subr.mxu0 0.0
    %1125 = vmatpush2.msra.mxu0 0.0
    %1126 = vmatprep.mubr.f32.mxu0 0.0
    %1127 = vmatmul.mubr.f32.gmra.mxu0 %v989
    %v1128 = vpop.f32.mrf.mxu0
    %v1129 = vadd.f32 %v983, %v1128
    %v1130 = vpop.f32.mrf.mxu0
    %v1131 = vadd.f32 %v985, %v1130
    %1132 = vdwg.mxu0
    %v1133 = vld [vmem:[#allocation10] ss:$2 sm:$0xf]
    %v1135 = vlaneseq
    %v1136 = vshrl.u32 %v1135, 7
    %v1137 = vsub.s32 0, %v1136
    %v1138 = vrot.slane %v1133, %v1137
    %v1139 = vlaneseq
    %v1140 = vshrl.u32 %v1139, 7
    %v1141 = vsub.s32 1, %v1140
    %v1142 = vrot.slane %v1133, %v1141
    %v1143 = vlaneseq
    %v1144 = vshrl.u32 %v1143, 7
    %v1145 = vsub.s32 2, %v1144
    %v1146 = vrot.slane %v1133, %v1145
    %v1147 = vlaneseq
    %v1148 = vshrl.u32 %v1147, 7
    %v1149 = vsub.s32 3, %v1148
    %v1150 = vrot.slane %v1133, %v1149
    %v1155 = vadd.f32 %v1058, %v1138
    %v1156 = vadd.f32 %v1060, %v1142
    %v1157 = vadd.f32 %v1129, %v1146
    %v1158 = vadd.f32 %v1131, %v1150
    %vm1159 = vcmp.gt.f32.partialorder %v1155, 0.0
    %vm1160 = vcmp.gt.f32.partialorder %v1156, 0.0
    %vm1161 = vcmp.gt.f32.partialorder %v1157, 0.0
    %vm1162 = vcmp.gt.f32.partialorder %v1158, 0.0
    %v1163 = vmul.f32 %v1155, 0.01
    %v1164 = vmul.f32 %v1156, 0.01
    %v1165 = vmul.f32 %v1157, 0.01
    %v1166 = vmul.f32 %v1158, 0.01
    %v1167 = vsel %vm1159, %v1155, %v1163
    %v1168 = vsel %vm1160, %v1156, %v1164
    %v1169 = vsel %vm1161, %v1157, %v1165
    %v1170 = vsel %vm1162, %v1158, %v1166
    %v1171 = vld [vmem:[#allocation12] sm:$0xff]
    %v1172 = vld [vmem:[#allocation12 + $0x8] sm:$0xff]
    %v1173 = vld [vmem:[#allocation12 + $0x10] sm:$0xff]
    %v1174 = vld [vmem:[#allocation12 + $0x18] sm:$0xff]
    %v1175 = vld [vmem:[#allocation12 + $0x20] sm:$0xff]
    %v1176 = vld [vmem:[#allocation12 + $0x28] sm:$0xff]
    %v1177 = vld [vmem:[#allocation12 + $0x30] sm:$0xff]
    %v1178 = vld [vmem:[#allocation12 + $0x38] sm:$0xff]
    %v1179 = vld [vmem:[#allocation12 + $0x40] sm:$0xff]
    %v1180 = vld [vmem:[#allocation12 + $0x48] sm:$0xff]
    %v1181 = vld [vmem:[#allocation12 + $0x50] sm:$0xff]
    %v1182 = vld [vmem:[#allocation12 + $0x58] sm:$0xff]
    %v1183 = vld [vmem:[#allocation12 + $0x60] sm:$0xff]
    %v1184 = vld [vmem:[#allocation12 + $0x68] sm:$0xff]
    %v1185 = vld [vmem:[#allocation12 + $0x70] sm:$0xff]
    %v1186 = vld [vmem:[#allocation12 + $0x78] sm:$0xff]
    %v1187 = vld [vmem:[#allocation12 + $0x80] sm:$0xff]
    %v1188 = vld [vmem:[#allocation12 + $0x88] sm:$0xff]
    %v1189 = vld [vmem:[#allocation12 + $0x90] sm:$0xff]
    %v1190 = vld [vmem:[#allocation12 + $0x98] sm:$0xff]
    %v1191 = vld [vmem:[#allocation12 + $0xa0] sm:$0xff]
    %v1192 = vld [vmem:[#allocation12 + $0xa8] sm:$0xff]
    %v1193 = vld [vmem:[#allocation12 + $0xb0] sm:$0xff]
    %v1194 = vld [vmem:[#allocation12 + $0xb8] sm:$0xff]
    %v1195 = vld [vmem:[#allocation12 + $0xc0] sm:$0xff]
    %v1196 = vld [vmem:[#allocation12 + $0xc8] sm:$0xff]
    %v1197 = vld [vmem:[#allocation12 + $0xd0] sm:$0xff]
    %v1198 = vld [vmem:[#allocation12 + $0xd8] sm:$0xff]
    %v1199 = vld [vmem:[#allocation12 + $0xe0] sm:$0xff]
    %v1200 = vld [vmem:[#allocation12 + $0xe8] sm:$0xff]
    %v1201 = vld [vmem:[#allocation12 + $0xf0] sm:$0xff]
    %v1202 = vld [vmem:[#allocation12 + $0xf8] sm:$0xff]
    %v1203 = vld [vmem:[#allocation12 + $0x100] sm:$0xff]
    %v1204 = vld [vmem:[#allocation12 + $0x108] sm:$0xff]
    %v1205 = vld [vmem:[#allocation12 + $0x110] sm:$0xff]
    %v1206 = vld [vmem:[#allocation12 + $0x118] sm:$0xff]
    %v1207 = vld [vmem:[#allocation12 + $0x120] sm:$0xff]
    %v1208 = vld [vmem:[#allocation12 + $0x128] sm:$0xff]
    %v1209 = vld [vmem:[#allocation12 + $0x130] sm:$0xff]
    %v1210 = vld [vmem:[#allocation12 + $0x138] sm:$0xff]
    %v1211 = vld [vmem:[#allocation12 + $0x140] sm:$0xff]
    %v1212 = vld [vmem:[#allocation12 + $0x148] sm:$0xff]
    %v1213 = vld [vmem:[#allocation12 + $0x150] sm:$0xff]
    %v1214 = vld [vmem:[#allocation12 + $0x158] sm:$0xff]
    %v1215 = vld [vmem:[#allocation12 + $0x160] sm:$0xff]
    %v1216 = vld [vmem:[#allocation12 + $0x168] sm:$0xff]
    %v1217 = vld [vmem:[#allocation12 + $0x170] sm:$0xff]
    %v1218 = vld [vmem:[#allocation12 + $0x178] sm:$0xff]
    %v1219 = vld [vmem:[#allocation12 + $0x180] sm:$0xff]
    %v1220 = vld [vmem:[#allocation12 + $0x188] sm:$0xff]
    %v1221 = vld [vmem:[#allocation12 + $0x190] sm:$0xff]
    %v1222 = vld [vmem:[#allocation12 + $0x198] sm:$0xff]
    %v1223 = vld [vmem:[#allocation12 + $0x1a0] sm:$0xff]
    %v1224 = vld [vmem:[#allocation12 + $0x1a8] sm:$0xff]
    %v1225 = vld [vmem:[#allocation12 + $0x1b0] sm:$0xff]
    %v1226 = vld [vmem:[#allocation12 + $0x1b8] sm:$0xff]
    %v1227 = vld [vmem:[#allocation12 + $0x1c0] sm:$0xff]
    %v1228 = vld [vmem:[#allocation12 + $0x1c8] sm:$0xff]
    %v1229 = vld [vmem:[#allocation12 + $0x1d0] sm:$0xff]
    %v1230 = vld [vmem:[#allocation12 + $0x1d8] sm:$0xff]
    %v1231 = vld [vmem:[#allocation12 + $0x1e0] sm:$0xff]
    %v1232 = vld [vmem:[#allocation12 + $0x1e8] sm:$0xff]
    %v1233 = vld [vmem:[#allocation12 + $0x1f0] sm:$0xff]
    %v1234 = vld [vmem:[#allocation12 + $0x1f8] sm:$0xff]
    %v1235 = vld [vmem:[#allocation12 + $0x200] sm:$0xff]
    %v1236 = vld [vmem:[#allocation12 + $0x208] sm:$0xff]
    %v1237 = vld [vmem:[#allocation12 + $0x210] sm:$0xff]
    %v1238 = vld [vmem:[#allocation12 + $0x218] sm:$0xff]
    %v1239 = vld [vmem:[#allocation12 + $0x220] sm:$0xff]
    %v1240 = vld [vmem:[#allocation12 + $0x228] sm:$0xff]
    %v1241 = vld [vmem:[#allocation12 + $0x230] sm:$0xff]
    %v1242 = vld [vmem:[#allocation12 + $0x238] sm:$0xff]
    %v1243 = vld [vmem:[#allocation12 + $0x240] sm:$0xff]
    %v1244 = vld [vmem:[#allocation12 + $0x248] sm:$0xff]
    %v1245 = vld [vmem:[#allocation12 + $0x250] sm:$0xff]
    %v1246 = vld [vmem:[#allocation12 + $0x258] sm:$0xff]
    %v1247 = vld [vmem:[#allocation12 + $0x260] sm:$0xff]
    %v1248 = vld [vmem:[#allocation12 + $0x268] sm:$0xff]
    %v1249 = vld [vmem:[#allocation12 + $0x270] sm:$0xff]
    %v1250 = vld [vmem:[#allocation12 + $0x278] sm:$0xff]
    %v1251 = vld [vmem:[#allocation12 + $0x280] sm:$0xff]
    %v1252 = vld [vmem:[#allocation12 + $0x288] sm:$0xff]
    %v1253 = vld [vmem:[#allocation12 + $0x290] sm:$0xff]
    %v1254 = vld [vmem:[#allocation12 + $0x298] sm:$0xff]
    %v1255 = vld [vmem:[#allocation12 + $0x2a0] sm:$0xff]
    %v1256 = vld [vmem:[#allocation12 + $0x2a8] sm:$0xff]
    %v1257 = vld [vmem:[#allocation12 + $0x2b0] sm:$0xff]
    %v1258 = vld [vmem:[#allocation12 + $0x2b8] sm:$0xff]
    %v1259 = vld [vmem:[#allocation12 + $0x2c0] sm:$0xff]
    %v1260 = vld [vmem:[#allocation12 + $0x2c8] sm:$0xff]
    %v1261 = vld [vmem:[#allocation12 + $0x2d0] sm:$0xff]
    %v1262 = vld [vmem:[#allocation12 + $0x2d8] sm:$0xff]
    %v1263 = vld [vmem:[#allocation12 + $0x2e0] sm:$0xff]
    %v1264 = vld [vmem:[#allocation12 + $0x2e8] sm:$0xff]
    %v1265 = vld [vmem:[#allocation12 + $0x2f0] sm:$0xff]
    %v1266 = vld [vmem:[#allocation12 + $0x2f8] sm:$0xff]
    %v1267 = vld [vmem:[#allocation12 + $0x300] sm:$0xff]
    %v1268 = vld [vmem:[#allocation12 + $0x308] sm:$0xff]
    %v1269 = vld [vmem:[#allocation12 + $0x310] sm:$0xff]
    %v1270 = vld [vmem:[#allocation12 + $0x318] sm:$0xff]
    %v1271 = vld [vmem:[#allocation12 + $0x320] sm:$0xff]
    %v1272 = vld [vmem:[#allocation12 + $0x328] sm:$0xff]
    %v1273 = vld [vmem:[#allocation12 + $0x330] sm:$0xff]
    %v1274 = vld [vmem:[#allocation12 + $0x338] sm:$0xff]
    %v1275 = vld [vmem:[#allocation12 + $0x340] sm:$0xff]
    %v1276 = vld [vmem:[#allocation12 + $0x348] sm:$0xff]
    %v1277 = vld [vmem:[#allocation12 + $0x350] sm:$0xff]
    %v1278 = vld [vmem:[#allocation12 + $0x358] sm:$0xff]
    %v1279 = vld [vmem:[#allocation12 + $0x360] sm:$0xff]
    %v1280 = vld [vmem:[#allocation12 + $0x368] sm:$0xff]
    %v1281 = vld [vmem:[#allocation12 + $0x370] sm:$0xff]
    %v1282 = vld [vmem:[#allocation12 + $0x378] sm:$0xff]
    %v1283 = vld [vmem:[#allocation12 + $0x380] sm:$0xff]
    %v1284 = vld [vmem:[#allocation12 + $0x388] sm:$0xff]
    %v1285 = vld [vmem:[#allocation12 + $0x390] sm:$0xff]
    %v1286 = vld [vmem:[#allocation12 + $0x398] sm:$0xff]
    %v1287 = vld [vmem:[#allocation12 + $0x3a0] sm:$0xff]
    %v1288 = vld [vmem:[#allocation12 + $0x3a8] sm:$0xff]
    %v1289 = vld [vmem:[#allocation12 + $0x3b0] sm:$0xff]
    %v1290 = vld [vmem:[#allocation12 + $0x3b8] sm:$0xff]
    %v1291 = vld [vmem:[#allocation12 + $0x3c0] sm:$0xff]
    %v1292 = vld [vmem:[#allocation12 + $0x3c8] sm:$0xff]
    %v1293 = vld [vmem:[#allocation12 + $0x3d0] sm:$0xff]
    %v1294 = vld [vmem:[#allocation12 + $0x3d8] sm:$0xff]
    %v1295 = vld [vmem:[#allocation12 + $0x3e0] sm:$0xff]
    %v1296 = vld [vmem:[#allocation12 + $0x3e8] sm:$0xff]
    %v1297 = vld [vmem:[#allocation12 + $0x3f0] sm:$0xff]
    %v1298 = vld [vmem:[#allocation12 + $0x3f8] sm:$0xff]
    %v1299 = vld [vmem:[#allocation12 + $0x400] sm:$0xff]
    %v1300 = vld [vmem:[#allocation12 + $0x408] sm:$0xff]
    %v1301 = vld [vmem:[#allocation12 + $0x410] sm:$0xff]
    %v1302 = vld [vmem:[#allocation12 + $0x418] sm:$0xff]
    %v1303 = vld [vmem:[#allocation12 + $0x420] sm:$0xff]
    %v1304 = vld [vmem:[#allocation12 + $0x428] sm:$0xff]
    %v1305 = vld [vmem:[#allocation12 + $0x430] sm:$0xff]
    %v1306 = vld [vmem:[#allocation12 + $0x438] sm:$0xff]
    %v1307 = vld [vmem:[#allocation12 + $0x440] sm:$0xff]
    %v1308 = vld [vmem:[#allocation12 + $0x448] sm:$0xff]
    %v1309 = vld [vmem:[#allocation12 + $0x450] sm:$0xff]
    %v1310 = vld [vmem:[#allocation12 + $0x458] sm:$0xff]
    %v1311 = vld [vmem:[#allocation12 + $0x460] sm:$0xff]
    %v1312 = vld [vmem:[#allocation12 + $0x468] sm:$0xff]
    %v1313 = vld [vmem:[#allocation12 + $0x470] sm:$0xff]
    %v1314 = vld [vmem:[#allocation12 + $0x478] sm:$0xff]
    %v1315 = vld [vmem:[#allocation12 + $0x480] sm:$0xff]
    %v1316 = vld [vmem:[#allocation12 + $0x488] sm:$0xff]
    %v1317 = vld [vmem:[#allocation12 + $0x490] sm:$0xff]
    %v1318 = vld [vmem:[#allocation12 + $0x498] sm:$0xff]
    %v1319 = vld [vmem:[#allocation12 + $0x4a0] sm:$0xff]
    %v1320 = vld [vmem:[#allocation12 + $0x4a8] sm:$0xff]
    %v1321 = vld [vmem:[#allocation12 + $0x4b0] sm:$0xff]
    %v1322 = vld [vmem:[#allocation12 + $0x4b8] sm:$0xff]
    %v1323 = vld [vmem:[#allocation12 + $0x4c0] sm:$0xff]
    %v1324 = vld [vmem:[#allocation12 + $0x4c8] sm:$0xff]
    %v1325 = vld [vmem:[#allocation12 + $0x4d0] sm:$0xff]
    %v1326 = vld [vmem:[#allocation12 + $0x4d8] sm:$0xff]
    %v1327 = vld [vmem:[#allocation12 + $0x4e0] sm:$0xff]
    %v1328 = vld [vmem:[#allocation12 + $0x4e8] sm:$0xff]
    %v1329 = vld [vmem:[#allocation12 + $0x4f0] sm:$0xff]
    %v1330 = vld [vmem:[#allocation12 + $0x4f8] sm:$0xff]
    %v1331 = vld [vmem:[#allocation12 + $0x500] sm:$0xff]
    %v1332 = vld [vmem:[#allocation12 + $0x508] sm:$0xff]
    %v1333 = vld [vmem:[#allocation12 + $0x510] sm:$0xff]
    %v1334 = vld [vmem:[#allocation12 + $0x518] sm:$0xff]
    %v1335 = vld [vmem:[#allocation12 + $0x520] sm:$0xff]
    %v1336 = vld [vmem:[#allocation12 + $0x528] sm:$0xff]
    %v1337 = vld [vmem:[#allocation12 + $0x530] sm:$0xff]
    %v1338 = vld [vmem:[#allocation12 + $0x538] sm:$0xff]
    %v1339 = vld [vmem:[#allocation12 + $0x540] sm:$0xff]
    %v1340 = vld [vmem:[#allocation12 + $0x548] sm:$0xff]
    %v1341 = vld [vmem:[#allocation12 + $0x550] sm:$0xff]
    %v1342 = vld [vmem:[#allocation12 + $0x558] sm:$0xff]
    %v1343 = vld [vmem:[#allocation12 + $0x560] sm:$0xff]
    %v1344 = vld [vmem:[#allocation12 + $0x568] sm:$0xff]
    %v1345 = vld [vmem:[#allocation12 + $0x570] sm:$0xff]
    %v1346 = vld [vmem:[#allocation12 + $0x578] sm:$0xff]
    %v1347 = vld [vmem:[#allocation12 + $0x580] sm:$0xff]
    %v1348 = vld [vmem:[#allocation12 + $0x588] sm:$0xff]
    %v1349 = vld [vmem:[#allocation12 + $0x590] sm:$0xff]
    %v1350 = vld [vmem:[#allocation12 + $0x598] sm:$0xff]
    %v1351 = vld [vmem:[#allocation12 + $0x5a0] sm:$0xff]
    %v1352 = vld [vmem:[#allocation12 + $0x5a8] sm:$0xff]
    %v1353 = vld [vmem:[#allocation12 + $0x5b0] sm:$0xff]
    %v1354 = vld [vmem:[#allocation12 + $0x5b8] sm:$0xff]
    %v1355 = vld [vmem:[#allocation12 + $0x5c0] sm:$0xff]
    %v1356 = vld [vmem:[#allocation12 + $0x5c8] sm:$0xff]
    %v1357 = vld [vmem:[#allocation12 + $0x5d0] sm:$0xff]
    %v1358 = vld [vmem:[#allocation12 + $0x5d8] sm:$0xff]
    %v1359 = vld [vmem:[#allocation12 + $0x5e0] sm:$0xff]
    %v1360 = vld [vmem:[#allocation12 + $0x5e8] sm:$0xff]
    %v1361 = vld [vmem:[#allocation12 + $0x5f0] sm:$0xff]
    %v1362 = vld [vmem:[#allocation12 + $0x5f8] sm:$0xff]
    %v1363 = vld [vmem:[#allocation12 + $0x600] sm:$0xff]
    %v1364 = vld [vmem:[#allocation12 + $0x608] sm:$0xff]
    %v1365 = vld [vmem:[#allocation12 + $0x610] sm:$0xff]
    %v1366 = vld [vmem:[#allocation12 + $0x618] sm:$0xff]
    %v1367 = vld [vmem:[#allocation12 + $0x620] sm:$0xff]
    %v1368 = vld [vmem:[#allocation12 + $0x628] sm:$0xff]
    %v1369 = vld [vmem:[#allocation12 + $0x630] sm:$0xff]
    %v1370 = vld [vmem:[#allocation12 + $0x638] sm:$0xff]
    %v1371 = vld [vmem:[#allocation12 + $0x640] sm:$0xff]
    %v1372 = vld [vmem:[#allocation12 + $0x648] sm:$0xff]
    %v1373 = vld [vmem:[#allocation12 + $0x650] sm:$0xff]
    %v1374 = vld [vmem:[#allocation12 + $0x658] sm:$0xff]
    %v1375 = vld [vmem:[#allocation12 + $0x660] sm:$0xff]
    %v1376 = vld [vmem:[#allocation12 + $0x668] sm:$0xff]
    %v1377 = vld [vmem:[#allocation12 + $0x670] sm:$0xff]
    %v1378 = vld [vmem:[#allocation12 + $0x678] sm:$0xff]
    %v1379 = vld [vmem:[#allocation12 + $0x680] sm:$0xff]
    %v1380 = vld [vmem:[#allocation12 + $0x688] sm:$0xff]
    %v1381 = vld [vmem:[#allocation12 + $0x690] sm:$0xff]
    %v1382 = vld [vmem:[#allocation12 + $0x698] sm:$0xff]
    %v1383 = vld [vmem:[#allocation12 + $0x6a0] sm:$0xff]
    %v1384 = vld [vmem:[#allocation12 + $0x6a8] sm:$0xff]
    %v1385 = vld [vmem:[#allocation12 + $0x6b0] sm:$0xff]
    %v1386 = vld [vmem:[#allocation12 + $0x6b8] sm:$0xff]
    %v1387 = vld [vmem:[#allocation12 + $0x6c0] sm:$0xff]
    %v1388 = vld [vmem:[#allocation12 + $0x6c8] sm:$0xff]
    %v1389 = vld [vmem:[#allocation12 + $0x6d0] sm:$0xff]
    %v1390 = vld [vmem:[#allocation12 + $0x6d8] sm:$0xff]
    %v1391 = vld [vmem:[#allocation12 + $0x6e0] sm:$0xff]
    %v1392 = vld [vmem:[#allocation12 + $0x6e8] sm:$0xff]
    %v1393 = vld [vmem:[#allocation12 + $0x6f0] sm:$0xff]
    %v1394 = vld [vmem:[#allocation12 + $0x6f8] sm:$0xff]
    %v1395 = vld [vmem:[#allocation12 + $0x700] sm:$0xff]
    %v1396 = vld [vmem:[#allocation12 + $0x708] sm:$0xff]
    %v1397 = vld [vmem:[#allocation12 + $0x710] sm:$0xff]
    %v1398 = vld [vmem:[#allocation12 + $0x718] sm:$0xff]
    %v1399 = vld [vmem:[#allocation12 + $0x720] sm:$0xff]
    %v1400 = vld [vmem:[#allocation12 + $0x728] sm:$0xff]
    %v1401 = vld [vmem:[#allocation12 + $0x730] sm:$0xff]
    %v1402 = vld [vmem:[#allocation12 + $0x738] sm:$0xff]
    %v1403 = vld [vmem:[#allocation12 + $0x740] sm:$0xff]
    %v1404 = vld [vmem:[#allocation12 + $0x748] sm:$0xff]
    %v1405 = vld [vmem:[#allocation12 + $0x750] sm:$0xff]
    %v1406 = vld [vmem:[#allocation12 + $0x758] sm:$0xff]
    %v1407 = vld [vmem:[#allocation12 + $0x760] sm:$0xff]
    %v1408 = vld [vmem:[#allocation12 + $0x768] sm:$0xff]
    %v1409 = vld [vmem:[#allocation12 + $0x770] sm:$0xff]
    %v1410 = vld [vmem:[#allocation12 + $0x778] sm:$0xff]
    %v1411 = vld [vmem:[#allocation12 + $0x780] sm:$0xff]
    %v1412 = vld [vmem:[#allocation12 + $0x788] sm:$0xff]
    %v1413 = vld [vmem:[#allocation12 + $0x790] sm:$0xff]
    %v1414 = vld [vmem:[#allocation12 + $0x798] sm:$0xff]
    %v1415 = vld [vmem:[#allocation12 + $0x7a0] sm:$0xff]
    %v1416 = vld [vmem:[#allocation12 + $0x7a8] sm:$0xff]
    %v1417 = vld [vmem:[#allocation12 + $0x7b0] sm:$0xff]
    %v1418 = vld [vmem:[#allocation12 + $0x7b8] sm:$0xff]
    %v1419 = vld [vmem:[#allocation12 + $0x7c0] sm:$0xff]
    %v1420 = vld [vmem:[#allocation12 + $0x7c8] sm:$0xff]
    %v1421 = vld [vmem:[#allocation12 + $0x7d0] sm:$0xff]
    %v1422 = vld [vmem:[#allocation12 + $0x7d8] sm:$0xff]
    %v1423 = vld [vmem:[#allocation12 + $0x7e0] sm:$0xff]
    %v1424 = vld [vmem:[#allocation12 + $0x7e8] sm:$0xff]
    %v1425 = vld [vmem:[#allocation12 + $0x7f0] sm:$0xff]
    %v1426 = vld [vmem:[#allocation12 + $0x7f8] sm:$0xff]
    %s1427 = scalar_lea.vmem [#allocation10], 1
    %v1428 = vld [vmem:[%s1427] ss:$2 sm:$0xf]
    %v1430 = vlaneseq
    %v1431 = vshrl.u32 %v1430, 7
    %v1432 = vsub.s32 0, %v1431
    %v1433 = vrot.slane %v1428, %v1432
    %v1434 = vlaneseq
    %v1435 = vshrl.u32 %v1434, 7
    %v1436 = vsub.s32 1, %v1435
    %v1437 = vrot.slane %v1428, %v1436
    %v1438 = vlaneseq
    %v1439 = vshrl.u32 %v1438, 7
    %v1440 = vsub.s32 2, %v1439
    %v1441 = vrot.slane %v1428, %v1440
    %v1442 = vlaneseq
    %v1443 = vshrl.u32 %v1442, 7
    %v1444 = vsub.s32 3, %v1443
    %v1445 = vrot.slane %v1428, %v1444
    %1450 = vmatprep.subr.mxu0 %v1232
    %1451 = vmatpush1.msra.mxu0 %v1231
    %1452 = vmatprep.subr.mxu0 %v1228
    %1453 = vmatpush1.msra.mxu0 %v1227
    %1454 = vmatprep.subr.mxu0 %v1224
    %1455 = vmatpush1.msra.mxu0 %v1223
    %1456 = vmatprep.subr.mxu0 %v1220
    %1457 = vmatpush1.msra.mxu0 %v1219
    %1458 = vmatprep.subr.mxu0 %v1216
    %1459 = vmatpush1.msra.mxu0 %v1215
    %1460 = vmatprep.subr.mxu0 %v1212
    %1461 = vmatpush1.msra.mxu0 %v1211
    %1462 = vmatprep.subr.mxu0 %v1208
    %1463 = vmatpush1.msra.mxu0 %v1207
    %1464 = vmatprep.subr.mxu0 %v1204
    %1465 = vmatpush1.msra.mxu0 %v1203
    %1466 = vmatprep.subr.mxu0 %v1200
    %1467 = vmatpush1.msra.mxu0 %v1199
    %1468 = vmatprep.subr.mxu0 %v1196
    %1469 = vmatpush1.msra.mxu0 %v1195
    %1470 = vmatprep.subr.mxu0 %v1192
    %1471 = vmatpush1.msra.mxu0 %v1191
    %1472 = vmatprep.subr.mxu0 %v1188
    %1473 = vmatpush1.msra.mxu0 %v1187
    %1474 = vmatprep.subr.mxu0 %v1184
    %1475 = vmatpush1.msra.mxu0 %v1183
    %1476 = vmatprep.subr.mxu0 %v1180
    %1477 = vmatpush1.msra.mxu0 %v1179
    %1478 = vmatprep.subr.mxu0 %v1176
    %1479 = vmatpush1.msra.mxu0 %v1175
    %1480 = vmatprep.subr.mxu0 %v1172
    %1481 = vmatpush1.msra.mxu0 %v1171
    %1482 = vmatprep.subr.mxu0 %v1296
    %1483 = vmatpush2.msra.mxu0 %v1295
    %1484 = vmatprep.subr.mxu0 %v1292
    %1485 = vmatpush2.msra.mxu0 %v1291
    %1486 = vmatprep.subr.mxu0 %v1288
    %1487 = vmatpush2.msra.mxu0 %v1287
    %1488 = vmatprep.subr.mxu0 %v1284
    %1489 = vmatpush2.msra.mxu0 %v1283
    %1490 = vmatprep.subr.mxu0 %v1280
    %1491 = vmatpush2.msra.mxu0 %v1279
    %1492 = vmatprep.subr.mxu0 %v1276
    %1493 = vmatpush2.msra.mxu0 %v1275
    %1494 = vmatprep.subr.mxu0 %v1272
    %1495 = vmatpush2.msra.mxu0 %v1271
    %1496 = vmatprep.subr.mxu0 %v1268
    %1497 = vmatpush2.msra.mxu0 %v1267
    %1498 = vmatprep.subr.mxu0 %v1264
    %1499 = vmatpush2.msra.mxu0 %v1263
    %1500 = vmatprep.subr.mxu0 %v1260
    %1501 = vmatpush2.msra.mxu0 %v1259
    %1502 = vmatprep.subr.mxu0 %v1256
    %1503 = vmatpush2.msra.mxu0 %v1255
    %1504 = vmatprep.subr.mxu0 %v1252
    %1505 = vmatpush2.msra.mxu0 %v1251
    %1506 = vmatprep.subr.mxu0 %v1248
    %1507 = vmatpush2.msra.mxu0 %v1247
    %1508 = vmatprep.subr.mxu0 %v1244
    %1509 = vmatpush2.msra.mxu0 %v1243
    %1510 = vmatprep.subr.mxu0 %v1240
    %1511 = vmatpush2.msra.mxu0 %v1239
    %1512 = vmatprep.subr.mxu0 %v1236
    %1513 = vmatpush2.msra.mxu0 %v1235
    %1514 = vmatprep.mubr.f32.mxu0 %v1168
    %1515 = vmatmul.mubr.f32.gmra.mxu0 %v1167
    %v1516 = vpop.f32.mrf.mxu0
    %v1517 = vadd.f32 %v1433, %v1516
    %v1518 = vpop.f32.mrf.mxu0
    %v1519 = vadd.f32 %v1437, %v1518
    %1520 = vdwg.mxu0
    %1521 = vmatprep.subr.mxu0 %v1360
    %1522 = vmatpush1.msra.mxu0 %v1359
    %1523 = vmatprep.subr.mxu0 %v1356
    %1524 = vmatpush1.msra.mxu0 %v1355
    %1525 = vmatprep.subr.mxu0 %v1352
    %1526 = vmatpush1.msra.mxu0 %v1351
    %1527 = vmatprep.subr.mxu0 %v1348
    %1528 = vmatpush1.msra.mxu0 %v1347
    %1529 = vmatprep.subr.mxu0 %v1344
    %1530 = vmatpush1.msra.mxu0 %v1343
    %1531 = vmatprep.subr.mxu0 %v1340
    %1532 = vmatpush1.msra.mxu0 %v1339
    %1533 = vmatprep.subr.mxu0 %v1336
    %1534 = vmatpush1.msra.mxu0 %v1335
    %1535 = vmatprep.subr.mxu0 %v1332
    %1536 = vmatpush1.msra.mxu0 %v1331
    %1537 = vmatprep.subr.mxu0 %v1328
    %1538 = vmatpush1.msra.mxu0 %v1327
    %1539 = vmatprep.subr.mxu0 %v1324
    %1540 = vmatpush1.msra.mxu0 %v1323
    %1541 = vmatprep.subr.mxu0 %v1320
    %1542 = vmatpush1.msra.mxu0 %v1319
    %1543 = vmatprep.subr.mxu0 %v1316
    %1544 = vmatpush1.msra.mxu0 %v1315
    %1545 = vmatprep.subr.mxu0 %v1312
    %1546 = vmatpush1.msra.mxu0 %v1311
    %1547 = vmatprep.subr.mxu0 %v1308
    %1548 = vmatpush1.msra.mxu0 %v1307
    %1549 = vmatprep.subr.mxu0 %v1304
    %1550 = vmatpush1.msra.mxu0 %v1303
    %1551 = vmatprep.subr.mxu0 %v1300
    %1552 = vmatpush1.msra.mxu0 %v1299
    %1553 = vmatprep.subr.mxu0 %v1424
    %1554 = vmatpush2.msra.mxu0 %v1423
    %1555 = vmatprep.subr.mxu0 %v1420
    %1556 = vmatpush2.msra.mxu0 %v1419
    %1557 = vmatprep.subr.mxu0 %v1416
    %1558 = vmatpush2.msra.mxu0 %v1415
    %1559 = vmatprep.subr.mxu0 %v1412
    %1560 = vmatpush2.msra.mxu0 %v1411
    %1561 = vmatprep.subr.mxu0 %v1408
    %1562 = vmatpush2.msra.mxu0 %v1407
    %1563 = vmatprep.subr.mxu0 %v1404
    %1564 = vmatpush2.msra.mxu0 %v1403
    %1565 = vmatprep.subr.mxu0 %v1400
    %1566 = vmatpush2.msra.mxu0 %v1399
    %1567 = vmatprep.subr.mxu0 %v1396
    %1568 = vmatpush2.msra.mxu0 %v1395
    %1569 = vmatprep.subr.mxu0 %v1392
    %1570 = vmatpush2.msra.mxu0 %v1391
    %1571 = vmatprep.subr.mxu0 %v1388
    %1572 = vmatpush2.msra.mxu0 %v1387
    %1573 = vmatprep.subr.mxu0 %v1384
    %1574 = vmatpush2.msra.mxu0 %v1383
    %1575 = vmatprep.subr.mxu0 %v1380
    %1576 = vmatpush2.msra.mxu0 %v1379
    %1577 = vmatprep.subr.mxu0 %v1376
    %1578 = vmatpush2.msra.mxu0 %v1375
    %1579 = vmatprep.subr.mxu0 %v1372
    %1580 = vmatpush2.msra.mxu0 %v1371
    %1581 = vmatprep.subr.mxu0 %v1368
    %1582 = vmatpush2.msra.mxu0 %v1367
    %1583 = vmatprep.subr.mxu0 %v1364
    %1584 = vmatpush2.msra.mxu0 %v1363
    %1585 = vmatprep.mubr.f32.mxu0 %v1170
    %1586 = vmatmul.mubr.f32.gmra.mxu0 %v1169
    %v1587 = vpop.f32.mrf.mxu0
    %v1588 = vadd.f32 %v1517, %v1587
    %v1589 = vpop.f32.mrf.mxu0
    %v1590 = vadd.f32 %v1519, %v1589
    %1591 = vdwg.mxu0
    %1592 = vmatprep.subr.mxu0 %v1234
    %1593 = vmatpush1.msra.mxu0 %v1233
    %1594 = vmatprep.subr.mxu0 %v1230
    %1595 = vmatpush1.msra.mxu0 %v1229
    %1596 = vmatprep.subr.mxu0 %v1226
    %1597 = vmatpush1.msra.mxu0 %v1225
    %1598 = vmatprep.subr.mxu0 %v1222
    %1599 = vmatpush1.msra.mxu0 %v1221
    %1600 = vmatprep.subr.mxu0 %v1218
    %1601 = vmatpush1.msra.mxu0 %v1217
    %1602 = vmatprep.subr.mxu0 %v1214
    %1603 = vmatpush1.msra.mxu0 %v1213
    %1604 = vmatprep.subr.mxu0 %v1210
    %1605 = vmatpush1.msra.mxu0 %v1209
    %1606 = vmatprep.subr.mxu0 %v1206
    %1607 = vmatpush1.msra.mxu0 %v1205
    %1608 = vmatprep.subr.mxu0 %v1202
    %1609 = vmatpush1.msra.mxu0 %v1201
    %1610 = vmatprep.subr.mxu0 %v1198
    %1611 = vmatpush1.msra.mxu0 %v1197
    %1612 = vmatprep.subr.mxu0 %v1194
    %1613 = vmatpush1.msra.mxu0 %v1193
    %1614 = vmatprep.subr.mxu0 %v1190
    %1615 = vmatpush1.msra.mxu0 %v1189
    %1616 = vmatprep.subr.mxu0 %v1186
    %1617 = vmatpush1.msra.mxu0 %v1185
    %1618 = vmatprep.subr.mxu0 %v1182
    %1619 = vmatpush1.msra.mxu0 %v1181
    %1620 = vmatprep.subr.mxu0 %v1178
    %1621 = vmatpush1.msra.mxu0 %v1177
    %1622 = vmatprep.subr.mxu0 %v1174
    %1623 = vmatpush1.msra.mxu0 %v1173
    %1624 = vmatprep.subr.mxu0 %v1298
    %1625 = vmatpush2.msra.mxu0 %v1297
    %1626 = vmatprep.subr.mxu0 %v1294
    %1627 = vmatpush2.msra.mxu0 %v1293
    %1628 = vmatprep.subr.mxu0 %v1290
    %1629 = vmatpush2.msra.mxu0 %v1289
    %1630 = vmatprep.subr.mxu0 %v1286
    %1631 = vmatpush2.msra.mxu0 %v1285
    %1632 = vmatprep.subr.mxu0 %v1282
    %1633 = vmatpush2.msra.mxu0 %v1281
    %1634 = vmatprep.subr.mxu0 %v1278
    %1635 = vmatpush2.msra.mxu0 %v1277
    %1636 = vmatprep.subr.mxu0 %v1274
    %1637 = vmatpush2.msra.mxu0 %v1273
    %1638 = vmatprep.subr.mxu0 %v1270
    %1639 = vmatpush2.msra.mxu0 %v1269
    %1640 = vmatprep.subr.mxu0 %v1266
    %1641 = vmatpush2.msra.mxu0 %v1265
    %1642 = vmatprep.subr.mxu0 %v1262
    %1643 = vmatpush2.msra.mxu0 %v1261
    %1644 = vmatprep.subr.mxu0 %v1258
    %1645 = vmatpush2.msra.mxu0 %v1257
    %1646 = vmatprep.subr.mxu0 %v1254
    %1647 = vmatpush2.msra.mxu0 %v1253
    %1648 = vmatprep.subr.mxu0 %v1250
    %1649 = vmatpush2.msra.mxu0 %v1249
    %1650 = vmatprep.subr.mxu0 %v1246
    %1651 = vmatpush2.msra.mxu0 %v1245
    %1652 = vmatprep.subr.mxu0 %v1242
    %1653 = vmatpush2.msra.mxu0 %v1241
    %1654 = vmatprep.subr.mxu0 %v1238
    %1655 = vmatpush2.msra.mxu0 %v1237
    %1656 = vmatprep.mubr.f32.mxu0 %v1168
    %1657 = vmatmul.mubr.f32.gmra.mxu0 %v1167
    %v1658 = vpop.f32.mrf.mxu0
    %v1659 = vadd.f32 %v1441, %v1658
    %v1660 = vpop.f32.mrf.mxu0
    %v1661 = vadd.f32 %v1445, %v1660
    %1662 = vdwg.mxu0
    %1663 = vmatprep.subr.mxu0 %v1362
    %1664 = vmatpush1.msra.mxu0 %v1361
    %1665 = vmatprep.subr.mxu0 %v1358
    %1666 = vmatpush1.msra.mxu0 %v1357
    %1667 = vmatprep.subr.mxu0 %v1354
    %1668 = vmatpush1.msra.mxu0 %v1353
    %1669 = vmatprep.subr.mxu0 %v1350
    %1670 = vmatpush1.msra.mxu0 %v1349
    %1671 = vmatprep.subr.mxu0 %v1346
    %1672 = vmatpush1.msra.mxu0 %v1345
    %1673 = vmatprep.subr.mxu0 %v1342
    %1674 = vmatpush1.msra.mxu0 %v1341
    %1675 = vmatprep.subr.mxu0 %v1338
    %1676 = vmatpush1.msra.mxu0 %v1337
    %1677 = vmatprep.subr.mxu0 %v1334
    %1678 = vmatpush1.msra.mxu0 %v1333
    %1679 = vmatprep.subr.mxu0 %v1330
    %1680 = vmatpush1.msra.mxu0 %v1329
    %1681 = vmatprep.subr.mxu0 %v1326
    %1682 = vmatpush1.msra.mxu0 %v1325
    %1683 = vmatprep.subr.mxu0 %v1322
    %1684 = vmatpush1.msra.mxu0 %v1321
    %1685 = vmatprep.subr.mxu0 %v1318
    %1686 = vmatpush1.msra.mxu0 %v1317
    %1687 = vmatprep.subr.mxu0 %v1314
    %1688 = vmatpush1.msra.mxu0 %v1313
    %1689 = vmatprep.subr.mxu0 %v1310
    %1690 = vmatpush1.msra.mxu0 %v1309
    %1691 = vmatprep.subr.mxu0 %v1306
    %1692 = vmatpush1.msra.mxu0 %v1305
    %1693 = vmatprep.subr.mxu0 %v1302
    %1694 = vmatpush1.msra.mxu0 %v1301
    %1695 = vmatprep.subr.mxu0 %v1426
    %1696 = vmatpush2.msra.mxu0 %v1425
    %1697 = vmatprep.subr.mxu0 %v1422
    %1698 = vmatpush2.msra.mxu0 %v1421
    %1699 = vmatprep.subr.mxu0 %v1418
    %1700 = vmatpush2.msra.mxu0 %v1417
    %1701 = vmatprep.subr.mxu0 %v1414
    %1702 = vmatpush2.msra.mxu0 %v1413
    %1703 = vmatprep.subr.mxu0 %v1410
    %1704 = vmatpush2.msra.mxu0 %v1409
    %1705 = vmatprep.subr.mxu0 %v1406
    %1706 = vmatpush2.msra.mxu0 %v1405
    %1707 = vmatprep.subr.mxu0 %v1402
    %1708 = vmatpush2.msra.mxu0 %v1401
    %1709 = vmatprep.subr.mxu0 %v1398
    %1710 = vmatpush2.msra.mxu0 %v1397
    %1711 = vmatprep.subr.mxu0 %v1394
    %1712 = vmatpush2.msra.mxu0 %v1393
    %1713 = vmatprep.subr.mxu0 %v1390
    %1714 = vmatpush2.msra.mxu0 %v1389
    %1715 = vmatprep.subr.mxu0 %v1386
    %1716 = vmatpush2.msra.mxu0 %v1385
    %1717 = vmatprep.subr.mxu0 %v1382
    %1718 = vmatpush2.msra.mxu0 %v1381
    %1719 = vmatprep.subr.mxu0 %v1378
    %1720 = vmatpush2.msra.mxu0 %v1377
    %1721 = vmatprep.subr.mxu0 %v1374
    %1722 = vmatpush2.msra.mxu0 %v1373
    %1723 = vmatprep.subr.mxu0 %v1370
    %1724 = vmatpush2.msra.mxu0 %v1369
    %1725 = vmatprep.subr.mxu0 %v1366
    %1726 = vmatpush2.msra.mxu0 %v1365
    %1727 = vmatprep.mubr.f32.mxu0 %v1170
    %1728 = vmatmul.mubr.f32.gmra.mxu0 %v1169
    %v1729 = vpop.f32.mrf.mxu0
    %v1730 = vadd.f32 %v1659, %v1729
    %v1731 = vpop.f32.mrf.mxu0
    %v1732 = vadd.f32 %v1661, %v1731
    %1733 = vdwg.mxu0
    %vm1734 = vcmp.gt.f32.partialorder %v1588, 0.0
    %vm1735 = vcmp.gt.f32.partialorder %v1590, 0.0
    %vm1736 = vcmp.gt.f32.partialorder %v1730, 0.0
    %vm1737 = vcmp.gt.f32.partialorder %v1732, 0.0
    %v1738 = vmul.f32 %v1588, 0.01
    %v1739 = vmul.f32 %v1590, 0.01
    %v1740 = vmul.f32 %v1730, 0.01
    %v1741 = vmul.f32 %v1732, 0.01
    %v1742 = vsel %vm1734, %v1588, %v1738
    %v1743 = vsel %vm1735, %v1590, %v1739
    %v1744 = vsel %vm1736, %v1730, %v1740
    %v1745 = vsel %vm1737, %v1732, %v1741
    %v1746 = vld [vmem:[%s12] sm:$0xff]
    %v1747 = vld [vmem:[%s12 + $0x8] sm:$0xff]
    %v1748 = vld [vmem:[%s12 + $0x10] sm:$0xff]
    %v1749 = vld [vmem:[%s12 + $0x18] sm:$0xff]
    %v1750 = vld [vmem:[%s12 + $0x20] sm:$0xff]
    %v1751 = vld [vmem:[%s12 + $0x28] sm:$0xff]
    %v1752 = vld [vmem:[%s12 + $0x30] sm:$0xff]
    %v1753 = vld [vmem:[%s12 + $0x38] sm:$0xff]
    %v1754 = vld [vmem:[%s12 + $0x40] sm:$0xff]
    %v1755 = vld [vmem:[%s12 + $0x48] sm:$0xff]
    %v1756 = vld [vmem:[%s12 + $0x50] sm:$0xff]
    %v1757 = vld [vmem:[%s12 + $0x58] sm:$0xff]
    %v1758 = vld [vmem:[%s12 + $0x60] sm:$0xff]
    %v1759 = vld [vmem:[%s12 + $0x68] sm:$0xff]
    %v1760 = vld [vmem:[%s12 + $0x70] sm:$0xff]
    %v1761 = vld [vmem:[%s12 + $0x78] sm:$0xff]
    %v1762 = vld [vmem:[%s12 + $0x80] sm:$0xff]
    %v1763 = vld [vmem:[%s12 + $0x88] sm:$0xff]
    %v1764 = vld [vmem:[%s12 + $0x90] sm:$0xff]
    %v1765 = vld [vmem:[%s12 + $0x98] sm:$0xff]
    %v1766 = vld [vmem:[%s12 + $0xa0] sm:$0xff]
    %v1767 = vld [vmem:[%s12 + $0xa8] sm:$0xff]
    %v1768 = vld [vmem:[%s12 + $0xb0] sm:$0xff]
    %v1769 = vld [vmem:[%s12 + $0xb8] sm:$0xff]
    %v1770 = vld [vmem:[%s12 + $0xc0] sm:$0xff]
    %v1771 = vld [vmem:[%s12 + $0xc8] sm:$0xff]
    %v1772 = vld [vmem:[%s12 + $0xd0] sm:$0xff]
    %v1773 = vld [vmem:[%s12 + $0xd8] sm:$0xff]
    %v1774 = vld [vmem:[%s12 + $0xe0] sm:$0xff]
    %v1775 = vld [vmem:[%s12 + $0xe8] sm:$0xff]
    %v1776 = vld [vmem:[%s12 + $0xf0] sm:$0xff]
    %v1777 = vld [vmem:[%s12 + $0xf8] sm:$0xff]
    %v1778 = vld [vmem:[%s12 + $0x100] sm:$0xff]
    %v1779 = vld [vmem:[%s12 + $0x108] sm:$0xff]
    %v1780 = vld [vmem:[%s12 + $0x110] sm:$0xff]
    %v1781 = vld [vmem:[%s12 + $0x118] sm:$0xff]
    %v1782 = vld [vmem:[%s12 + $0x120] sm:$0xff]
    %v1783 = vld [vmem:[%s12 + $0x128] sm:$0xff]
    %v1784 = vld [vmem:[%s12 + $0x130] sm:$0xff]
    %v1785 = vld [vmem:[%s12 + $0x138] sm:$0xff]
    %v1786 = vld [vmem:[%s12 + $0x140] sm:$0xff]
    %v1787 = vld [vmem:[%s12 + $0x148] sm:$0xff]
    %v1788 = vld [vmem:[%s12 + $0x150] sm:$0xff]
    %v1789 = vld [vmem:[%s12 + $0x158] sm:$0xff]
    %v1790 = vld [vmem:[%s12 + $0x160] sm:$0xff]
    %v1791 = vld [vmem:[%s12 + $0x168] sm:$0xff]
    %v1792 = vld [vmem:[%s12 + $0x170] sm:$0xff]
    %v1793 = vld [vmem:[%s12 + $0x178] sm:$0xff]
    %v1794 = vld [vmem:[%s12 + $0x180] sm:$0xff]
    %v1795 = vld [vmem:[%s12 + $0x188] sm:$0xff]
    %v1796 = vld [vmem:[%s12 + $0x190] sm:$0xff]
    %v1797 = vld [vmem:[%s12 + $0x198] sm:$0xff]
    %v1798 = vld [vmem:[%s12 + $0x1a0] sm:$0xff]
    %v1799 = vld [vmem:[%s12 + $0x1a8] sm:$0xff]
    %v1800 = vld [vmem:[%s12 + $0x1b0] sm:$0xff]
    %v1801 = vld [vmem:[%s12 + $0x1b8] sm:$0xff]
    %v1802 = vld [vmem:[%s12 + $0x1c0] sm:$0xff]
    %v1803 = vld [vmem:[%s12 + $0x1c8] sm:$0xff]
    %v1804 = vld [vmem:[%s12 + $0x1d0] sm:$0xff]
    %v1805 = vld [vmem:[%s12 + $0x1d8] sm:$0xff]
    %v1806 = vld [vmem:[%s12 + $0x1e0] sm:$0xff]
    %v1807 = vld [vmem:[%s12 + $0x1e8] sm:$0xff]
    %v1808 = vld [vmem:[%s12 + $0x1f0] sm:$0xff]
    %v1809 = vld [vmem:[%s12 + $0x1f8] sm:$0xff]
    %v1810 = vld [vmem:[%s13] sm:$0x1]
    %v1812 = vlaneseq
    %v1813 = vshrl.u32 %v1812, 7
    %v1814 = vsub.s32 0, %v1813
    %v1815 = vrot.slane %v1810, %v1814
    %1817 = vmatprep.subr.mxu0 0.0
    %1818 = vmatpush1.msra.mxu0 %v1761
    %1819 = vmatprep.subr.mxu0 0.0
    %1820 = vmatpush1.msra.mxu0 %v1760
    %1821 = vmatprep.subr.mxu0 0.0
    %1822 = vmatpush1.msra.mxu0 %v1759
    %1823 = vmatprep.subr.mxu0 0.0
    %1824 = vmatpush1.msra.mxu0 %v1758
    %1825 = vmatprep.subr.mxu0 0.0
    %1826 = vmatpush1.msra.mxu0 %v1757
    %1827 = vmatprep.subr.mxu0 0.0
    %1828 = vmatpush1.msra.mxu0 %v1756
    %1829 = vmatprep.subr.mxu0 0.0
    %1830 = vmatpush1.msra.mxu0 %v1755
    %1831 = vmatprep.subr.mxu0 0.0
    %1832 = vmatpush1.msra.mxu0 %v1754
    %1833 = vmatprep.subr.mxu0 0.0
    %1834 = vmatpush1.msra.mxu0 %v1753
    %1835 = vmatprep.subr.mxu0 0.0
    %1836 = vmatpush1.msra.mxu0 %v1752
    %1837 = vmatprep.subr.mxu0 0.0
    %1838 = vmatpush1.msra.mxu0 %v1751
    %1839 = vmatprep.subr.mxu0 0.0
    %1840 = vmatpush1.msra.mxu0 %v1750
    %1841 = vmatprep.subr.mxu0 0.0
    %1842 = vmatpush1.msra.mxu0 %v1749
    %1843 = vmatprep.subr.mxu0 0.0
    %1844 = vmatpush1.msra.mxu0 %v1748
    %1845 = vmatprep.subr.mxu0 0.0
    %1846 = vmatpush1.msra.mxu0 %v1747
    %1847 = vmatprep.subr.mxu0 0.0
    %1848 = vmatpush1.msra.mxu0 %v1746
    %1849 = vmatprep.subr.mxu0 0.0
    %1850 = vmatpush2.msra.mxu0 %v1777
    %1851 = vmatprep.subr.mxu0 0.0
    %1852 = vmatpush2.msra.mxu0 %v1776
    %1853 = vmatprep.subr.mxu0 0.0
    %1854 = vmatpush2.msra.mxu0 %v1775
    %1855 = vmatprep.subr.mxu0 0.0
    %1856 = vmatpush2.msra.mxu0 %v1774
    %1857 = vmatprep.subr.mxu0 0.0
    %1858 = vmatpush2.msra.mxu0 %v1773
    %1859 = vmatprep.subr.mxu0 0.0
    %1860 = vmatpush2.msra.mxu0 %v1772
    %1861 = vmatprep.subr.mxu0 0.0
    %1862 = vmatpush2.msra.mxu0 %v1771
    %1863 = vmatprep.subr.mxu0 0.0
    %1864 = vmatpush2.msra.mxu0 %v1770
    %1865 = vmatprep.subr.mxu0 0.0
    %1866 = vmatpush2.msra.mxu0 %v1769
    %1867 = vmatprep.subr.mxu0 0.0
    %1868 = vmatpush2.msra.mxu0 %v1768
    %1869 = vmatprep.subr.mxu0 0.0
    %1870 = vmatpush2.msra.mxu0 %v1767
    %1871 = vmatprep.subr.mxu0 0.0
    %1872 = vmatpush2.msra.mxu0 %v1766
    %1873 = vmatprep.subr.mxu0 0.0
    %1874 = vmatpush2.msra.mxu0 %v1765
    %1875 = vmatprep.subr.mxu0 0.0
    %1876 = vmatpush2.msra.mxu0 %v1764
    %1877 = vmatprep.subr.mxu0 0.0
    %1878 = vmatpush2.msra.mxu0 %v1763
    %1879 = vmatprep.subr.mxu0 0.0
    %1880 = vmatpush2.msra.mxu0 %v1762
    %1881 = vmatprep.mubr.f32.mxu0 %v1743
    %1882 = vmatmul.mubr.f32.gmra.mxu0 %v1742
    %v1883 = vpop.f32.mrf.mxu0
    %v1884 = vadd.f32 %v1815, %v1883
    %v1885 = vpop.f32.mrf.mxu0
    %1886 = vdwg.mxu0
    %1887 = vmatprep.subr.mxu0 0.0
    %1888 = vmatpush1.msra.mxu0 %v1793
    %1889 = vmatprep.subr.mxu0 0.0
    %1890 = vmatpush1.msra.mxu0 %v1792
    %1891 = vmatprep.subr.mxu0 0.0
    %1892 = vmatpush1.msra.mxu0 %v1791
    %1893 = vmatprep.subr.mxu0 0.0
    %1894 = vmatpush1.msra.mxu0 %v1790
    %1895 = vmatprep.subr.mxu0 0.0
    %1896 = vmatpush1.msra.mxu0 %v1789
    %1897 = vmatprep.subr.mxu0 0.0
    %1898 = vmatpush1.msra.mxu0 %v1788
    %1899 = vmatprep.subr.mxu0 0.0
    %1900 = vmatpush1.msra.mxu0 %v1787
    %1901 = vmatprep.subr.mxu0 0.0
    %1902 = vmatpush1.msra.mxu0 %v1786
    %1903 = vmatprep.subr.mxu0 0.0
    %1904 = vmatpush1.msra.mxu0 %v1785
    %1905 = vmatprep.subr.mxu0 0.0
    %1906 = vmatpush1.msra.mxu0 %v1784
    %1907 = vmatprep.subr.mxu0 0.0
    %1908 = vmatpush1.msra.mxu0 %v1783
    %1909 = vmatprep.subr.mxu0 0.0
    %1910 = vmatpush1.msra.mxu0 %v1782
    %1911 = vmatprep.subr.mxu0 0.0
    %1912 = vmatpush1.msra.mxu0 %v1781
    %1913 = vmatprep.subr.mxu0 0.0
    %1914 = vmatpush1.msra.mxu0 %v1780
    %1915 = vmatprep.subr.mxu0 0.0
    %1916 = vmatpush1.msra.mxu0 %v1779
    %1917 = vmatprep.subr.mxu0 0.0
    %1918 = vmatpush1.msra.mxu0 %v1778
    %1919 = vmatprep.subr.mxu0 0.0
    %1920 = vmatpush2.msra.mxu0 %v1809
    %1921 = vmatprep.subr.mxu0 0.0
    %1922 = vmatpush2.msra.mxu0 %v1808
    %1923 = vmatprep.subr.mxu0 0.0
    %1924 = vmatpush2.msra.mxu0 %v1807
    %1925 = vmatprep.subr.mxu0 0.0
    %1926 = vmatpush2.msra.mxu0 %v1806
    %1927 = vmatprep.subr.mxu0 0.0
    %1928 = vmatpush2.msra.mxu0 %v1805
    %1929 = vmatprep.subr.mxu0 0.0
    %1930 = vmatpush2.msra.mxu0 %v1804
    %1931 = vmatprep.subr.mxu0 0.0
    %1932 = vmatpush2.msra.mxu0 %v1803
    %1933 = vmatprep.subr.mxu0 0.0
    %1934 = vmatpush2.msra.mxu0 %v1802
    %1935 = vmatprep.subr.mxu0 0.0
    %1936 = vmatpush2.msra.mxu0 %v1801
    %1937 = vmatprep.subr.mxu0 0.0
    %1938 = vmatpush2.msra.mxu0 %v1800
    %1939 = vmatprep.subr.mxu0 0.0
    %1940 = vmatpush2.msra.mxu0 %v1799
    %1941 = vmatprep.subr.mxu0 0.0
    %1942 = vmatpush2.msra.mxu0 %v1798
    %1943 = vmatprep.subr.mxu0 0.0
    %1944 = vmatpush2.msra.mxu0 %v1797
    %1945 = vmatprep.subr.mxu0 0.0
    %1946 = vmatpush2.msra.mxu0 %v1796
    %1947 = vmatprep.subr.mxu0 0.0
    %1948 = vmatpush2.msra.mxu0 %v1795
    %1949 = vmatprep.subr.mxu0 0.0
    %1950 = vmatpush2.msra.mxu0 %v1794
    %1951 = vmatprep.mubr.f32.mxu0 %v1745
    %1952 = vmatmul.mubr.f32.gmra.mxu0 %v1744
    %v1953 = vpop.f32.mrf.mxu0
    %v1954 = vadd.f32 %v1884, %v1953
    %v1955 = vpop.f32.mrf.mxu0
    %1956 = vdwg.mxu0
    %vm1957 = vcmask 9216
    %1958 = vst.msk [vmem:[%s14] sm:$0x3] %vm1957, %v1954
    // Predicated region
    $region86: #{policy_value_forward.1} parent=1 // pred_check
      _
    $region87: #{policy_value_forward.1} parent=1 // pred_check_branch
      %1960 = sbr.rel (0) target = $region89
    $region88: #{policy_value_forward.1} parent=1 // pred_region
      _
    $region89: #{policy_value_forward.1} parent=1 // pred_fallthru
      _
    // Predicated region
    $region90: #{policy_value_forward.1} parent=1 // pred_check
      _
    $region91: #{policy_value_forward.1} parent=1 // pred_check_branch
      %1962 = sbr.rel (0) target = $region93
    $region92: #{policy_value_forward.1} parent=1 // pred_region
      _
    $region93: #{policy_value_forward.1} parent=1 // pred_fallthru
      _
    %1963 = vsyncpa [#allocation3], 1
    %1964 = vsyncpa [#allocation5], 1
    %1965 = vsyncpa [#allocation8], 1
    %1966 = vsyncpa [#allocation11], 1

</llo_original>
